<compile_context>
chip_gen: v7x
topology: tpu7x:2x2x1
jax: 0.10.0
libtpu: 0.0.40
codegen_flags: <defaults>
</compile_context>

<pallas_src>
import jax
import jax.numpy as jnp
import numpy as np
from jax.experimental import pallas as pl
from jax.experimental.pallas import tpu as pltpu

EPS = 1e-5


def _band_weights(w_hwio, W):
    """Lower a 3x3 'same' conv weight (HWIO) to 3 block-Toeplitz matrices.

    band[kh, jw*Cin + ci, iw*Cout + co] = w[kh, kw, ci, co]  iff  jw == iw + kw - 1,
    so `x_row(jh) @ band[kh]` applies all horizontal taps (with zero padding in W)
    of kernel row kh to one folded activation row.
    Returns (3, W*Cin, W*Cout) float32.
    """
    KH, KW, _, _ = w_hwio.shape
    bands = []
    for kh in range(KH):
        b = None
        for kw in range(KW):
            blk = jnp.kron(jnp.eye(W, W, k=1 - kw, dtype=jnp.float32),
                           w_hwio[kh, kw].astype(jnp.float32))
            b = blk if b is None else b + blk
        bands.append(b)
    return jnp.stack(bands)


def _make_kernel(N, H, W, C):
    """Build the fused BasicBlock kernel for static (N, H, W, C)."""
    NH = N * H
    WC = W * C
    inv_cnt = 1.0 / float(N * H * W)  # BN normalizer (biased variance)

    def conv3x3(xv, band_ref):
        # xv: (N, H, WC) f32 activations; band_ref: (3, WC, WC) banded weights.
        zrow = jnp.zeros((N, 1, WC), jnp.float32)
        xh = jnp.concatenate([zrow, xv, zrow], axis=1)  # 'same' pad in H, in VMEM
        acc = jnp.zeros((NH, WC), jnp.float32)
        for kh in range(3):                             # 3 MXU matmuls per conv
            lhs = xh[:, kh:kh + H, :].reshape(NH, WC)
            acc = acc + jnp.dot(lhs, band_ref[kh],
                                preferred_element_type=jnp.float32)
        return acc                                      # (NH, WC)

    def batchnorm(y, gmat, gamma, beta):
        # Single-pass batch statistics over (N, H, W) per channel.
        # gmat reduces over the W lane groups and broadcasts the per-channel
        # result back onto the folded (W*C) lane axis.
        yg = jnp.dot(y, gmat, preferred_element_type=jnp.float32)
        y2g = jnp.dot(y * y, gmat, preferred_element_type=jnp.float32)
        mean = jnp.sum(yg, axis=0, keepdims=True) * inv_cnt    # (1, WC)
        ex2 = jnp.sum(y2g, axis=0, keepdims=True) * inv_cnt    # (1, WC)
        var = ex2 - mean * mean
        return (y - mean) * jax.lax.rsqrt(var + EPS) * gamma + beta

    def kernel(x_ref, w1_ref, w2_ref, g1_ref, b1_ref, g2_ref, b2_ref,
               gm_ref, o_ref):
        x = x_ref[...]                                  # (N, H, WC)
        gm = gm_ref[...]                                # (WC, WC)

        # Stage 1: relu(bn1(conv1(x)))
        h = conv3x3(x, w1_ref)
        h = jnp.maximum(batchnorm(h, gm, g1_ref[...], b1_ref[...]), 0.0)

        # Stage 2: relu(bn2(conv2(h)) + identity)   (downsample=None)
        y = conv3x3(h.reshape(N, H, WC), w2_ref)
        y = batchnorm(y, gm, g2_ref[...], b2_ref[...])
        y = y + x.reshape(NH, WC)
        o_ref[...] = jnp.maximum(y, 0.0).astype(o_ref.dtype)

    return kernel


@jax.jit
def basic_block_forward(x_nchw, params):
    """BasicBlock forward. x_nchw: (N, C, H, W) float32 (PyTorch layout)."""
    w1, g1, b1, w2, g2, b2 = params
    N, C, H, W = x_nchw.shape
    planes = w1.shape[0]
    assert planes == C, "only the stride=1 / downsample=None path is implemented"

    # --- host-side glue (layout folding + weight lowering, done once) ---
    x = jnp.transpose(x_nchw, (0, 2, 3, 1)).reshape(N, H, W * C)   # folded NHWC
    w1b = _band_weights(jnp.transpose(w1, (2, 3, 1, 0)), W)        # OIHW -> HWIO
    w2b = _band_weights(jnp.transpose(w2, (2, 3, 1, 0)), W)
    gmat = jnp.kron(jnp.ones((W, W), jnp.float32),
                    jnp.eye(C, dtype=jnp.float32))                 # (W*C, W*C)
    fold = lambda v: jnp.tile(v.astype(jnp.float32), W).reshape(1, W * C)

    out = pl.pallas_call(
        _make_kernel(N, H, W, C),
        out_shape=jax.ShapeDtypeStruct((N * H, W * C), jnp.float32),
        in_specs=[pl.BlockSpec(memory_space=pltpu.MemorySpace.VMEM)
                  for _ in range(8)],
        out_specs=pl.BlockSpec(memory_space=pltpu.MemorySpace.VMEM),
    )(x, w1b, w2b, fold(g1), fold(b1), fold(g2), fold(b2), gmat)

    return jnp.transpose(out.reshape(N, H, W, C), (0, 3, 1, 2))


def ref_forward(x_nchw, params):
    """Pure-JAX reference matching the PyTorch module (training-mode BN)."""
    w1, g1, b1, w2, g2, b2 = params

    def conv(x, w):
        return jax.lax.conv_general_dilated(
            x, w, window_strides=(1, 1), padding=((1, 1), (1, 1)),
            dimension_numbers=("NCHW", "OIHW", "NCHW"))

    def bn(x, g, b):
        mean = x.mean(axis=(0, 2, 3), keepdims=True)
        var = ((x - mean) ** 2).mean(axis=(0, 2, 3), keepdims=True)
        return ((x - mean) * jax.lax.rsqrt(var + EPS)
                * g.reshape(1, -1, 1, 1) + b.reshape(1, -1, 1, 1))

    out = jnp.maximum(bn(conv(x_nchw, w1), g1, b1), 0.0)
    out = bn(conv(out, w2), g2, b2) + x_nchw
    return jnp.maximum(out, 0.0)


if __name__ == "__main__":
    # Small shapes: batch=2, inplanes=planes=4, spatial=16 (stride=1, no downsample).
    N, C, H, W = 2, 4, 16, 16
    inplanes, planes = C, C

    key = jax.random.PRNGKey(0)
    kx, kw1, kw2, kg1, kb1, kg2, kb2 = jax.random.split(key, 7)

    x = jax.random.normal(kx, (N, C, H, W), jnp.float32)
    # Conv2d weight shape: (out, in, 3, 3); BN params shape: (planes,)
    w1 = jax.random.normal(kw1, (planes, inplanes, 3, 3), jnp.float32) * 0.1
    w2 = jax.random.normal(kw2, (planes, planes, 3, 3), jnp.float32) * 0.1
    g1 = 1.0 + 0.1 * jax.random.normal(kg1, (planes,), jnp.float32)
    b1 = 0.1 * jax.random.normal(kb1, (planes,), jnp.float32)
    g2 = 1.0 + 0.1 * jax.random.normal(kg2, (planes,), jnp.float32)
    b2 = 0.1 * jax.random.normal(kb2, (planes,), jnp.float32)
    params = (w1, g1, b1, w2, g2, b2)

    out = jax.block_until_ready(basic_block_forward(x, params))
    ref = jax.block_until_ready(ref_forward(x, params))

    assert out.shape == (N, planes, H, W), out.shape
    np.testing.assert_allclose(np.asarray(out), np.asarray(ref),
                               rtol=1e-4, atol=1e-4)
    print("KERNEL_OK")
</pallas_src>

<mosaic_0001>
module attributes {stable_mosaic.version = 11 : i64} {
  func.func @kernel(%arg0: memref<2x16x64xf32, #tpu.memory_space<vmem>>, %arg1: memref<3x64x64xf32, #tpu.memory_space<vmem>>, %arg2: memref<3x64x64xf32, #tpu.memory_space<vmem>>, %arg3: memref<1x64xf32, #tpu.memory_space<vmem>>, %arg4: memref<1x64xf32, #tpu.memory_space<vmem>>, %arg5: memref<1x64xf32, #tpu.memory_space<vmem>>, %arg6: memref<1x64xf32, #tpu.memory_space<vmem>>, %arg7: memref<64x64xf32, #tpu.memory_space<vmem>>, %arg8: memref<32x64xf32, #tpu.memory_space<vmem>>) attributes {dimension_semantics = [], scalar_prefetch = 0 : i64, scratch_operands = 0 : i64, tpu.core_type = #tpu.core_type<tc>} {
    %c0 = arith.constant 0 : index
    %c0_0 = arith.constant 0 : index
    %c0_1 = arith.constant 0 : index
    %0 = vector.load %arg0[%c0, %c0_0, %c0_1] : memref<2x16x64xf32, #tpu.memory_space<vmem>>, vector<2x16x64xf32>
    %c0_2 = arith.constant 0 : index
    %c0_3 = arith.constant 0 : index
    %1 = vector.load %arg7[%c0_2, %c0_3] : memref<64x64xf32, #tpu.memory_space<vmem>>, vector<64x64xf32>
    %cst = arith.constant 0.000000e+00 : f32
    %2 = vector.broadcast %cst : f32 to vector<2x1x64xf32>
    %3 = tpu.concatenate %2, %0, %2 in 1 : vector<2x1x64xf32>, vector<2x16x64xf32>, vector<2x1x64xf32> -> vector<2x18x64xf32>
    %cst_4 = arith.constant 0.000000e+00 : f32
    %4 = vector.broadcast %cst_4 : f32 to vector<32x64xf32>
    %5 = vector.extract_strided_slice %3 {offsets = [0, 0, 0], sizes = [2, 16, 64], strides = [1, 1, 1]} : vector<2x18x64xf32> to vector<2x16x64xf32>
    %6 = vector.shape_cast %5 : vector<2x16x64xf32> to vector<32x64xf32>
    %c0_5 = arith.constant 0 : index
    %c0_6 = arith.constant 0 : index
    %c0_7 = arith.constant 0 : index
    %7 = vector.load %arg1[%c0_5, %c0_6, %c0_7] : memref<3x64x64xf32, #tpu.memory_space<vmem>>, vector<1x64x64xf32>
    %8 = vector.shape_cast %7 : vector<1x64x64xf32> to vector<64x64xf32>
    %cst_8 = arith.constant dense<0.000000e+00> : vector<32x64xf32>
    %9 = tpu.matmul %6, %8, %cst_8 {dimension_numbers = #tpu.dot_dimension_numbers<[1], [0], [0], [1], [0, 0, 1, 1], [], []>} : vector<32x64xf32>, vector<64x64xf32>, vector<32x64xf32> -> vector<32x64xf32>
    %10 = arith.addf %4, %9 : vector<32x64xf32>
    %11 = vector.extract_strided_slice %3 {offsets = [0, 1, 0], sizes = [2, 16, 64], strides = [1, 1, 1]} : vector<2x18x64xf32> to vector<2x16x64xf32>
    %12 = vector.shape_cast %11 : vector<2x16x64xf32> to vector<32x64xf32>
    %c1 = arith.constant 1 : index
    %c0_9 = arith.constant 0 : index
    %c0_10 = arith.constant 0 : index
    %13 = vector.load %arg1[%c1, %c0_9, %c0_10] : memref<3x64x64xf32, #tpu.memory_space<vmem>>, vector<1x64x64xf32>
    %14 = vector.shape_cast %13 : vector<1x64x64xf32> to vector<64x64xf32>
    %cst_11 = arith.constant dense<0.000000e+00> : vector<32x64xf32>
    %15 = tpu.matmul %12, %14, %cst_11 {dimension_numbers = #tpu.dot_dimension_numbers<[1], [0], [0], [1], [0, 0, 1, 1], [], []>} : vector<32x64xf32>, vector<64x64xf32>, vector<32x64xf32> -> vector<32x64xf32>
    %16 = arith.addf %10, %15 : vector<32x64xf32>
    %17 = vector.extract_strided_slice %3 {offsets = [0, 2, 0], sizes = [2, 16, 64], strides = [1, 1, 1]} : vector<2x18x64xf32> to vector<2x16x64xf32>
    %18 = vector.shape_cast %17 : vector<2x16x64xf32> to vector<32x64xf32>
    %c2 = arith.constant 2 : index
    %c0_12 = arith.constant 0 : index
    %c0_13 = arith.constant 0 : index
    %19 = vector.load %arg1[%c2, %c0_12, %c0_13] : memref<3x64x64xf32, #tpu.memory_space<vmem>>, vector<1x64x64xf32>
    %20 = vector.shape_cast %19 : vector<1x64x64xf32> to vector<64x64xf32>
    %cst_14 = arith.constant dense<0.000000e+00> : vector<32x64xf32>
    %21 = tpu.matmul %18, %20, %cst_14 {dimension_numbers = #tpu.dot_dimension_numbers<[1], [0], [0], [1], [0, 0, 1, 1], [], []>} : vector<32x64xf32>, vector<64x64xf32>, vector<32x64xf32> -> vector<32x64xf32>
    %22 = arith.addf %16, %21 : vector<32x64xf32>
    %c0_15 = arith.constant 0 : index
    %c0_16 = arith.constant 0 : index
    %23 = vector.load %arg3[%c0_15, %c0_16] : memref<1x64xf32, #tpu.memory_space<vmem>>, vector<1x64xf32>
    %c0_17 = arith.constant 0 : index
    %c0_18 = arith.constant 0 : index
    %24 = vector.load %arg4[%c0_17, %c0_18] : memref<1x64xf32, #tpu.memory_space<vmem>>, vector<1x64xf32>
    %cst_19 = arith.constant dense<0.000000e+00> : vector<32x64xf32>
    %25 = tpu.matmul %22, %1, %cst_19 {dimension_numbers = #tpu.dot_dimension_numbers<[1], [0], [0], [1], [0, 0, 1, 1], [], []>} : vector<32x64xf32>, vector<64x64xf32>, vector<32x64xf32> -> vector<32x64xf32>
    %26 = arith.mulf %22, %22 : vector<32x64xf32>
    %cst_20 = arith.constant dense<0.000000e+00> : vector<32x64xf32>
    %27 = tpu.matmul %26, %1, %cst_20 {dimension_numbers = #tpu.dot_dimension_numbers<[1], [0], [0], [1], [0, 0, 1, 1], [], []>} : vector<32x64xf32>, vector<64x64xf32>, vector<32x64xf32> -> vector<32x64xf32>
    %cst_21 = arith.constant dense<0.000000e+00> : vector<64xf32>
    %28 = vector.multi_reduction <add>, %25, %cst_21 [0] : vector<32x64xf32> to vector<64xf32>
    %29 = vector.shape_cast %28 : vector<64xf32> to vector<1x64xf32>
    %cst_22 = arith.constant 0.001953125 : f32
    %30 = vector.broadcast %cst_22 : f32 to vector<1x64xf32>
    %31 = arith.mulf %29, %30 : vector<1x64xf32>
    %cst_23 = arith.constant dense<0.000000e+00> : vector<64xf32>
    %32 = vector.multi_reduction <add>, %27, %cst_23 [0] : vector<32x64xf32> to vector<64xf32>
    %33 = vector.shape_cast %32 : vector<64xf32> to vector<1x64xf32>
    %cst_24 = arith.constant 0.001953125 : f32
    %34 = vector.broadcast %cst_24 : f32 to vector<1x64xf32>
    %35 = arith.mulf %33, %34 : vector<1x64xf32>
    %36 = arith.mulf %31, %31 : vector<1x64xf32>
    %37 = arith.subf %35, %36 : vector<1x64xf32>
    %38 = vector.broadcast %31 : vector<1x64xf32> to vector<32x64xf32>
    %39 = arith.subf %22, %38 : vector<32x64xf32>
    %cst_25 = arith.constant 9.99999974E-6 : f32
    %40 = vector.broadcast %cst_25 : f32 to vector<1x64xf32>
    %41 = arith.addf %37, %40 : vector<1x64xf32>
    %42 = math.rsqrt %41 : vector<1x64xf32>
    %43 = vector.broadcast %42 : vector<1x64xf32> to vector<32x64xf32>
    %44 = arith.mulf %39, %43 : vector<32x64xf32>
    %45 = vector.broadcast %23 : vector<1x64xf32> to vector<32x64xf32>
    %46 = arith.mulf %44, %45 : vector<32x64xf32>
    %47 = vector.broadcast %24 : vector<1x64xf32> to vector<32x64xf32>
    %48 = arith.addf %46, %47 : vector<32x64xf32>
    %cst_26 = arith.constant 0.000000e+00 : f32
    %49 = vector.broadcast %cst_26 : f32 to vector<32x64xf32>
    %50 = arith.maximumf %48, %49 : vector<32x64xf32>
    %51 = vector.shape_cast %50 : vector<32x64xf32> to vector<2x16x64xf32>
    %cst_27 = arith.constant 0.000000e+00 : f32
    %52 = vector.broadcast %cst_27 : f32 to vector<2x1x64xf32>
    %53 = tpu.concatenate %52, %51, %52 in 1 : vector<2x1x64xf32>, vector<2x16x64xf32>, vector<2x1x64xf32> -> vector<2x18x64xf32>
    %cst_28 = arith.constant 0.000000e+00 : f32
    %54 = vector.broadcast %cst_28 : f32 to vector<32x64xf32>
    %55 = vector.extract_strided_slice %53 {offsets = [0, 0, 0], sizes = [2, 16, 64], strides = [1, 1, 1]} : vector<2x18x64xf32> to vector<2x16x64xf32>
    %56 = vector.shape_cast %55 : vector<2x16x64xf32> to vector<32x64xf32>
    %c0_29 = arith.constant 0 : index
    %c0_30 = arith.constant 0 : index
    %c0_31 = arith.constant 0 : index
    %57 = vector.load %arg2[%c0_29, %c0_30, %c0_31] : memref<3x64x64xf32, #tpu.memory_space<vmem>>, vector<1x64x64xf32>
    %58 = vector.shape_cast %57 : vector<1x64x64xf32> to vector<64x64xf32>
    %cst_32 = arith.constant dense<0.000000e+00> : vector<32x64xf32>
    %59 = tpu.matmul %56, %58, %cst_32 {dimension_numbers = #tpu.dot_dimension_numbers<[1], [0], [0], [1], [0, 0, 1, 1], [], []>} : vector<32x64xf32>, vector<64x64xf32>, vector<32x64xf32> -> vector<32x64xf32>
    %60 = arith.addf %54, %59 : vector<32x64xf32>
    %61 = vector.extract_strided_slice %53 {offsets = [0, 1, 0], sizes = [2, 16, 64], strides = [1, 1, 1]} : vector<2x18x64xf32> to vector<2x16x64xf32>
    %62 = vector.shape_cast %61 : vector<2x16x64xf32> to vector<32x64xf32>
    %c1_33 = arith.constant 1 : index
    %c0_34 = arith.constant 0 : index
    %c0_35 = arith.constant 0 : index
    %63 = vector.load %arg2[%c1_33, %c0_34, %c0_35] : memref<3x64x64xf32, #tpu.memory_space<vmem>>, vector<1x64x64xf32>
    %64 = vector.shape_cast %63 : vector<1x64x64xf32> to vector<64x64xf32>
    %cst_36 = arith.constant dense<0.000000e+00> : vector<32x64xf32>
    %65 = tpu.matmul %62, %64, %cst_36 {dimension_numbers = #tpu.dot_dimension_numbers<[1], [0], [0], [1], [0, 0, 1, 1], [], []>} : vector<32x64xf32>, vector<64x64xf32>, vector<32x64xf32> -> vector<32x64xf32>
    %66 = arith.addf %60, %65 : vector<32x64xf32>
    %67 = vector.extract_strided_slice %53 {offsets = [0, 2, 0], sizes = [2, 16, 64], strides = [1, 1, 1]} : vector<2x18x64xf32> to vector<2x16x64xf32>
    %68 = vector.shape_cast %67 : vector<2x16x64xf32> to vector<32x64xf32>
    %c2_37 = arith.constant 2 : index
    %c0_38 = arith.constant 0 : index
    %c0_39 = arith.constant 0 : index
    %69 = vector.load %arg2[%c2_37, %c0_38, %c0_39] : memref<3x64x64xf32, #tpu.memory_space<vmem>>, vector<1x64x64xf32>
    %70 = vector.shape_cast %69 : vector<1x64x64xf32> to vector<64x64xf32>
    %cst_40 = arith.constant dense<0.000000e+00> : vector<32x64xf32>
    %71 = tpu.matmul %68, %70, %cst_40 {dimension_numbers = #tpu.dot_dimension_numbers<[1], [0], [0], [1], [0, 0, 1, 1], [], []>} : vector<32x64xf32>, vector<64x64xf32>, vector<32x64xf32> -> vector<32x64xf32>
    %72 = arith.addf %66, %71 : vector<32x64xf32>
    %c0_41 = arith.constant 0 : index
    %c0_42 = arith.constant 0 : index
    %73 = vector.load %arg5[%c0_41, %c0_42] : memref<1x64xf32, #tpu.memory_space<vmem>>, vector<1x64xf32>
    %c0_43 = arith.constant 0 : index
    %c0_44 = arith.constant 0 : index
    %74 = vector.load %arg6[%c0_43, %c0_44] : memref<1x64xf32, #tpu.memory_space<vmem>>, vector<1x64xf32>
    %cst_45 = arith.constant dense<0.000000e+00> : vector<32x64xf32>
    %75 = tpu.matmul %72, %1, %cst_45 {dimension_numbers = #tpu.dot_dimension_numbers<[1], [0], [0], [1], [0, 0, 1, 1], [], []>} : vector<32x64xf32>, vector<64x64xf32>, vector<32x64xf32> -> vector<32x64xf32>
    %76 = arith.mulf %72, %72 : vector<32x64xf32>
    %cst_46 = arith.constant dense<0.000000e+00> : vector<32x64xf32>
    %77 = tpu.matmul %76, %1, %cst_46 {dimension_numbers = #tpu.dot_dimension_numbers<[1], [0], [0], [1], [0, 0, 1, 1], [], []>} : vector<32x64xf32>, vector<64x64xf32>, vector<32x64xf32> -> vector<32x64xf32>
    %cst_47 = arith.constant dense<0.000000e+00> : vector<64xf32>
    %78 = vector.multi_reduction <add>, %75, %cst_47 [0] : vector<32x64xf32> to vector<64xf32>
    %79 = vector.shape_cast %78 : vector<64xf32> to vector<1x64xf32>
    %cst_48 = arith.constant 0.001953125 : f32
    %80 = vector.broadcast %cst_48 : f32 to vector<1x64xf32>
    %81 = arith.mulf %79, %80 : vector<1x64xf32>
    %cst_49 = arith.constant dense<0.000000e+00> : vector<64xf32>
    %82 = vector.multi_reduction <add>, %77, %cst_49 [0] : vector<32x64xf32> to vector<64xf32>
    %83 = vector.shape_cast %82 : vector<64xf32> to vector<1x64xf32>
    %cst_50 = arith.constant 0.001953125 : f32
    %84 = vector.broadcast %cst_50 : f32 to vector<1x64xf32>
    %85 = arith.mulf %83, %84 : vector<1x64xf32>
    %86 = arith.mulf %81, %81 : vector<1x64xf32>
    %87 = arith.subf %85, %86 : vector<1x64xf32>
    %88 = vector.broadcast %81 : vector<1x64xf32> to vector<32x64xf32>
    %89 = arith.subf %72, %88 : vector<32x64xf32>
    %cst_51 = arith.constant 9.99999974E-6 : f32
    %90 = vector.broadcast %cst_51 : f32 to vector<1x64xf32>
    %91 = arith.addf %87, %90 : vector<1x64xf32>
    %92 = math.rsqrt %91 : vector<1x64xf32>
    %93 = vector.broadcast %92 : vector<1x64xf32> to vector<32x64xf32>
    %94 = arith.mulf %89, %93 : vector<32x64xf32>
    %95 = vector.broadcast %73 : vector<1x64xf32> to vector<32x64xf32>
    %96 = arith.mulf %94, %95 : vector<32x64xf32>
    %97 = vector.broadcast %74 : vector<1x64xf32> to vector<32x64xf32>
    %98 = arith.addf %96, %97 : vector<32x64xf32>
    %99 = vector.shape_cast %0 : vector<2x16x64xf32> to vector<32x64xf32>
    %100 = arith.addf %98, %99 : vector<32x64xf32>
    %cst_52 = arith.constant 0.000000e+00 : f32
    %101 = vector.broadcast %cst_52 : f32 to vector<32x64xf32>
    %102 = arith.maximumf %100, %101 : vector<32x64xf32>
    %c0_53 = arith.constant 0 : index
    %c0_54 = arith.constant 0 : index
    %103 = vector.load %arg8[%c0_53, %c0_54] : memref<32x64xf32, #tpu.memory_space<vmem>>, vector<32x64xf32>
    tpu.vector_store %arg8[%c0_53, %c0_54], %102 {strides = array<i32>} : memref<32x64xf32, #tpu.memory_space<vmem>>, vector<32x64xf32>,
    return
  }
}

</mosaic_0001>

<llo_original>
// kernel: tile.23
$region0: #{tile.23}
  #allocation0 [shape = 's32[1]{0}', space=sflag, size = 0x4, scoped, tag = 'scoped memory for tile.23']
  %s0 = inlined_call_operand.vmem [shape: f32[4], index: 0, kind: input, shape index: {}]
  %s1 = inlined_call_operand.vmem [shape: f32[16,4], index: 1, kind: output, shape index: {}]
  // Predicated region
  $region2: #{tile.23} parent=0 // pred_check
    _
  $region3: #{tile.23} parent=0 // pred_check_branch
    %3 = sbr.rel (0) target = $region5
  $region4: #{tile.23} parent=0 // pred_region
    _
  $region5: #{tile.23} parent=0 // pred_fallthru
    _
  %v4 = vld [vmem:[%s0] ss:$0 sm:$0xff]
  %5 = vst [vmem:[%s1] sm:$0xff] %v4
  %s6 = scalar_lea.vmem %s1, 8
  %7 = vst [vmem:[%s6] sm:$0xff] %v4

// kernel: tile.24
$region0: #{tile.24}
  %s0 = inlined_call_operand.vmem [shape: f32[16,4], index: 0, kind: input, shape index: {}]
  %s1 = inlined_call_operand.vmem [shape: f32[1,64], index: 1, kind: output, shape index: {}]
  $region1: #{tile.24} parent=0
    #allocation0 [shape = 'u8[4096]{0}', space=vmem, size = 0x1000, scoped, tag = 'scoped mem for output reshape']
    %v2 = vld [vmem:[%s0] sm:$0x1]
    %vm3 = vcmask 31744
    %4 = vst.msk [vmem:[#allocation0] sm:$0x1] %vm3, %v2
    %s5 = scalar_lea.vmem %s0, 15
    %v6 = vld [vmem:[%s5] sm:$0x1]
    %7 = vrot.lane.b32.xlu0 %v6, 60
    %v8 = vpop.permute.xlu0 %7
    %vm9 = vcmask 523744
    %10 = vst.msk [vmem:[#allocation0] sm:$0x1] %vm9, %v8
    %s11 = scalar_lea.vmem %s0, 14
    %v12 = vld [vmem:[%s11] sm:$0x1]
    %13 = vrot.lane.b32.xlu0 %v12, 56
    %v14 = vpop.permute.xlu0 %13
    %vm15 = vcmask 490944
    %16 = vst.msk [vmem:[#allocation0] sm:$0x1] %vm15, %v14
    %s17 = scalar_lea.vmem %s0, 13
    %v18 = vld [vmem:[%s17] sm:$0x1]
    %19 = vrot.lane.b32.xlu0 %v18, 52
    %v20 = vpop.permute.xlu0 %19
    %vm21 = vcmask 458144
    %22 = vst.msk [vmem:[#allocation0] sm:$0x1] %vm21, %v20
    %s23 = scalar_lea.vmem %s0, 12
    %v24 = vld [vmem:[%s23] sm:$0x1]
    %25 = vrot.lane.b32.xlu0 %v24, 48
    %v26 = vpop.permute.xlu0 %25
    %vm27 = vcmask 425344
    %28 = vst.msk [vmem:[#allocation0] sm:$0x1] %vm27, %v26
    %s29 = scalar_lea.vmem %s0, 11
    %v30 = vld [vmem:[%s29] sm:$0x1]
    %31 = vrot.lane.b32.xlu0 %v30, 44
    %v32 = vpop.permute.xlu0 %31
    %vm33 = vcmask 392544
    %34 = vst.msk [vmem:[#allocation0] sm:$0x1] %vm33, %v32
    %s35 = scalar_lea.vmem %s0, 10
    %v36 = vld [vmem:[%s35] sm:$0x1]
    %37 = vrot.lane.b32.xlu0 %v36, 40
    %v38 = vpop.permute.xlu0 %37
    %vm39 = vcmask 359744
    %40 = vst.msk [vmem:[#allocation0] sm:$0x1] %vm39, %v38
    %s41 = scalar_lea.vmem %s0, 9
    %v42 = vld [vmem:[%s41] sm:$0x1]
    %43 = vrot.lane.b32.xlu0 %v42, 36
    %v44 = vpop.permute.xlu0 %43
    %vm45 = vcmask 326944
    %46 = vst.msk [vmem:[#allocation0] sm:$0x1] %vm45, %v44
    %s47 = scalar_lea.vmem %s0, 8
    %v48 = vld [vmem:[%s47] sm:$0x1]
    %49 = vrot.lane.b32.xlu0 %v48, 32
    %v50 = vpop.permute.xlu0 %49
    %vm51 = vcmask 294144
    %52 = vst.msk [vmem:[#allocation0] sm:$0x1] %vm51, %v50
    %s53 = scalar_lea.vmem %s0, 7
    %v54 = vld [vmem:[%s53] sm:$0x1]
    %55 = vrot.lane.b32.xlu0 %v54, 28
    %v56 = vpop.permute.xlu0 %55
    %vm57 = vcmask 261344
    %58 = vst.msk [vmem:[#allocation0] sm:$0x1] %vm57, %v56
    %s59 = scalar_lea.vmem %s0, 6
    %v60 = vld [vmem:[%s59] sm:$0x1]
    %61 = vrot.lane.b32.xlu0 %v60, 24
    %v62 = vpop.permute.xlu0 %61
    %vm63 = vcmask 228544
    %64 = vst.msk [vmem:[#allocation0] sm:$0x1] %vm63, %v62
    %s65 = scalar_lea.vmem %s0, 5
    %v66 = vld [vmem:[%s65] sm:$0x1]
    %67 = vrot.lane.b32.xlu0 %v66, 20
    %v68 = vpop.permute.xlu0 %67
    %vm69 = vcmask 195744
    %70 = vst.msk [vmem:[#allocation0] sm:$0x1] %vm69, %v68
    %s71 = scalar_lea.vmem %s0, 4
    %v72 = vld [vmem:[%s71] sm:$0x1]
    %73 = vrot.lane.b32.xlu0 %v72, 16
    %v74 = vpop.permute.xlu0 %73
    %vm75 = vcmask 162944
    %76 = vst.msk [vmem:[#allocation0] sm:$0x1] %vm75, %v74
    %s77 = scalar_lea.vmem %s0, 3
    %v78 = vld [vmem:[%s77] sm:$0x1]
    %79 = vrot.lane.b32.xlu0 %v78, 12
    %v80 = vpop.permute.xlu0 %79
    %vm81 = vcmask 130144
    %82 = vst.msk [vmem:[#allocation0] sm:$0x1] %vm81, %v80
    %s83 = scalar_lea.vmem %s0, 2
    %v84 = vld [vmem:[%s83] sm:$0x1]
    %85 = vrot.lane.b32.xlu0 %v84, 8
    %v86 = vpop.permute.xlu0 %85
    %vm87 = vcmask 97344
    %88 = vst.msk [vmem:[#allocation0] sm:$0x1] %vm87, %v86
    %s89 = scalar_lea.vmem %s0, 1
    %v90 = vld [vmem:[%s89] sm:$0x1]
    %91 = vrot.lane.b32.xlu0 %v90, 4
    %v92 = vpop.permute.xlu0 %91
    %vm93 = vcmask 64544
    %94 = vst.msk [vmem:[#allocation0] sm:$0x1] %vm93, %v92
    %s96 = sshllo.u32 0, 1
    %v98 = vld [vmem:[#allocation0] sm:%s96]
    %s99 = sshllo.u32 0, 1
    %100 = vst [vmem:[%s1] sm:%s99] %v98

// kernel: basic_block_forward.1
$region0: #{basic_block_forward.1}
  #allocation0 [shape = 'u32[]', space=smem, size = 0x4, offset = 0x4, fixed_abs, tag = 'smem constant byte address 0x4 - core index']
  #allocation1 [shape = 'u32[144,128]{1,0:T(1,128)}', space=vmem, size = 0x12000, scoped, tag = 'internal scratch']
  %s0 = inlined_call_operand.vmem [shape: f32[2,16,64], index: 0, kind: input, shape index: {}]
  %s1 = inlined_call_operand.vmem [shape: f32[3,64,64], index: 1, kind: input, shape index: {}]
  %s2 = inlined_call_operand.vmem [shape: f32[3,64,64], index: 2, kind: input, shape index: {}]
  %s3 = inlined_call_operand.vmem [shape: f32[1,64], index: 3, kind: input, shape index: {}]
  %s4 = inlined_call_operand.vmem [shape: f32[1,64], index: 4, kind: input, shape index: {}]
  %s5 = inlined_call_operand.vmem [shape: f32[1,64], index: 5, kind: input, shape index: {}]
  %s6 = inlined_call_operand.vmem [shape: f32[1,64], index: 6, kind: input, shape index: {}]
  %s7 = inlined_call_operand.vmem [shape: f32[64,64], index: 7, kind: input, shape index: {}]
  %s8 = inlined_call_operand.vmem [shape: f32[32,64], index: 8, kind: output, shape index: {}]
  %s9 = sld [smem:[#allocation0]]
  $region42: #{basic_block_forward.1} parent=0
    _
  %s11 = ssub.s32 1, %s9
  %s12 = scalar_select 0, %s11, %s9
  // Predicated region
  $region2: #{basic_block_forward.1} parent=0 // pred_check
    _
  $region3: #{basic_block_forward.1} parent=0 // pred_check_branch
    %14 = sbr.rel (0) target = $region5
  $region4: #{basic_block_forward.1} parent=0 // pred_region
    _
  $region5: #{basic_block_forward.1} parent=0 // pred_fallthru
    _
  // Predicated region
  $region6: #{basic_block_forward.1} parent=0 // pred_check
    _
  $region7: #{basic_block_forward.1} parent=0 // pred_check_branch
    %16 = sbr.rel (0) target = $region9
  $region8: #{basic_block_forward.1} parent=0 // pred_region
    _
  $region9: #{basic_block_forward.1} parent=0 // pred_fallthru
    _
  // Predicated region
  $region10: #{basic_block_forward.1} parent=0 // pred_check
    _
  $region11: #{basic_block_forward.1} parent=0 // pred_check_branch
    %18 = sbr.rel (0) target = $region13
  $region12: #{basic_block_forward.1} parent=0 // pred_region
    _
  $region13: #{basic_block_forward.1} parent=0 // pred_fallthru
    _
  // Predicated region
  $region14: #{basic_block_forward.1} parent=0 // pred_check
    _
  $region15: #{basic_block_forward.1} parent=0 // pred_check_branch
    %20 = sbr.rel (0) target = $region17
  $region16: #{basic_block_forward.1} parent=0 // pred_region
    _
  $region17: #{basic_block_forward.1} parent=0 // pred_fallthru
    _
  // Predicated region
  $region18: #{basic_block_forward.1} parent=0 // pred_check
    _
  $region19: #{basic_block_forward.1} parent=0 // pred_check_branch
    %22 = sbr.rel (0) target = $region21
  $region20: #{basic_block_forward.1} parent=0 // pred_region
    _
  $region21: #{basic_block_forward.1} parent=0 // pred_fallthru
    _
  // Predicated region
  $region22: #{basic_block_forward.1} parent=0 // pred_check
    _
  $region23: #{basic_block_forward.1} parent=0 // pred_check_branch
    %24 = sbr.rel (0) target = $region25
  $region24: #{basic_block_forward.1} parent=0 // pred_region
    _
  $region25: #{basic_block_forward.1} parent=0 // pred_fallthru
    _
  // Predicated region
  $region26: #{basic_block_forward.1} parent=0 // pred_check
    _
  $region27: #{basic_block_forward.1} parent=0 // pred_check_branch
    %26 = sbr.rel (0) target = $region29
  $region28: #{basic_block_forward.1} parent=0 // pred_region
    _
  $region29: #{basic_block_forward.1} parent=0 // pred_fallthru
    _
  // Predicated region
  $region30: #{basic_block_forward.1} parent=0 // pred_check
    _
  $region31: #{basic_block_forward.1} parent=0 // pred_check_branch
    %28 = sbr.rel (0) target = $region33
  $region32: #{basic_block_forward.1} parent=0 // pred_region
    _
  $region33: #{basic_block_forward.1} parent=0 // pred_fallthru
    _
  %v29 = vld [vmem:[%s0] sm:$0xff]
  %v30 = vld [vmem:[%s0 + $0x8] sm:$0xff]
  %v31 = vld [vmem:[%s0 + $0x10] sm:$0xff]
  %v32 = vld [vmem:[%s0 + $0x18] sm:$0xff]
  %v33 = vld [vmem:[%s7] sm:$0xff]
  %v34 = vld [vmem:[%s7 + $0x8] sm:$0xff]
  %v35 = vld [vmem:[%s7 + $0x10] sm:$0xff]
  %v36 = vld [vmem:[%s7 + $0x18] sm:$0xff]
  %v37 = vld [vmem:[%s7 + $0x20] sm:$0xff]
  %v38 = vld [vmem:[%s7 + $0x28] sm:$0xff]
  %v39 = vld [vmem:[%s7 + $0x30] sm:$0xff]
  %v40 = vld [vmem:[%s7 + $0x38] sm:$0xff]
  %vm45 = vcmask 1040384
  %v46 = vrot.slane %v29, 7
  %v47 = vrot.slane %v30, 7
  %v48 = vsel %vm45, %v46, %v47
  %v49 = vrot.slane %v31, 7
  %v50 = vrot.slane %v32, 7
  %v51 = vsel %vm45, %v49, %v50
  %v56 = vsel %vm45, 0.0, %v46
  %v57 = vsel %vm45, 0.0, %v49
  %v58 = vsel %vm45, %v47, 0.0
  %v59 = vsel %vm45, %v50, 0.0
  %v60 = vld [vmem:[%s1] sm:$0xff]
  %v61 = vld [vmem:[%s1 + $0x8] sm:$0xff]
  %v62 = vld [vmem:[%s1 + $0x10] sm:$0xff]
  %v63 = vld [vmem:[%s1 + $0x18] sm:$0xff]
  %v64 = vld [vmem:[%s1 + $0x20] sm:$0xff]
  %v65 = vld [vmem:[%s1 + $0x28] sm:$0xff]
  %v66 = vld [vmem:[%s1 + $0x30] sm:$0xff]
  %v67 = vld [vmem:[%s1 + $0x38] sm:$0xff]
  %vm72 = vcmask 1046528
  %v73 = vrot.slane %v56, 1
  %v74 = vrot.slane %v48, 1
  %v75 = vsel %vm72, %v73, %v74
  %v76 = vrot.slane %v58, 1
  %v77 = vsel %vm72, %v74, %v76
  %v78 = vrot.slane %v57, 1
  %v79 = vrot.slane %v51, 1
  %v80 = vsel %vm72, %v78, %v79
  %v81 = vrot.slane %v59, 1
  %v82 = vsel %vm72, %v79, %v81
  %s83 = scalar_lea.vmem %s1, 64
  %v84 = vld [vmem:[%s83] sm:$0xff]
  %v85 = vld [vmem:[%s83 + $0x8] sm:$0xff]
  %v86 = vld [vmem:[%s83 + $0x10] sm:$0xff]
  %v87 = vld [vmem:[%s83 + $0x18] sm:$0xff]
  %v88 = vld [vmem:[%s83 + $0x20] sm:$0xff]
  %v89 = vld [vmem:[%s83 + $0x28] sm:$0xff]
  %v90 = vld [vmem:[%s83 + $0x30] sm:$0xff]
  %v91 = vld [vmem:[%s83 + $0x38] sm:$0xff]
  %vm92 = vcmask 523264
  %v93 = vsel %vm92, %v75, 0
  %v95 = vsel %vm92, %v77, 0
  %v97 = vsel %vm92, %v80, 0
  %v99 = vsel %vm92, %v82, 0
  %101 = vmatprep.subr.mxu0 0.0
  %102 = vmatpush1.msra.mxu0 %v84
  %103 = vmatprep.subr.mxu0 0.0
  %104 = vmatpush1.msra.mxu0 %v85
  %105 = vmatprep.subr.mxu0 0.0
  %106 = vmatpush1.msra.mxu0 %v86
  %107 = vmatprep.subr.mxu0 0.0
  %108 = vmatpush1.msra.mxu0 %v87
  %109 = vmatprep.subr.mxu0 0.0
  %110 = vmatpush1.msra.mxu0 %v88
  %111 = vmatprep.subr.mxu0 0.0
  %112 = vmatpush1.msra.mxu0 %v89
  %113 = vmatprep.subr.mxu0 0.0
  %114 = vmatpush1.msra.mxu0 %v90
  %115 = vmatprep.subr.mxu0 0.0
  %116 = vmatpush1.msra.mxu0 %v91
  %117 = vmatprep.subr.mxu0 0.0
  %118 = vmatpush1.msra.mxu0 0.0
  %119 = vmatprep.subr.mxu0 0.0
  %120 = vmatpush1.msra.mxu0 0.0
  %121 = vmatprep.subr.mxu0 0.0
  %122 = vmatpush1.msra.mxu0 0.0
  %123 = vmatprep.subr.mxu0 0.0
  %124 = vmatpush1.msra.mxu0 0.0
  %125 = vmatprep.subr.mxu0 0.0
  %126 = vmatpush1.msra.mxu0 0.0
  %127 = vmatprep.subr.mxu0 0.0
  %128 = vmatpush1.msra.mxu0 0.0
  %129 = vmatprep.subr.mxu0 0.0
  %130 = vmatpush1.msra.mxu0 0.0
  %131 = vmatprep.subr.mxu0 0.0
  %132 = vmatpush1.msra.mxu0 0.0
  %133 = vmatprep.subr.mxu0 0.0
  %134 = vmatpush1.msra.mxu0 0.0
  %135 = vmatprep.subr.mxu0 0.0
  %136 = vmatpush1.msra.mxu0 0.0
  %137 = vmatprep.subr.mxu0 0.0
  %138 = vmatpush1.msra.mxu0 0.0
  %139 = vmatprep.subr.mxu0 0.0
  %140 = vmatpush1.msra.mxu0 0.0
  %141 = vmatprep.subr.mxu0 0.0
  %142 = vmatpush1.msra.mxu0 0.0
  %143 = vmatprep.subr.mxu0 0.0
  %144 = vmatpush1.msra.mxu0 0.0
  %145 = vmatprep.subr.mxu0 0.0
  %146 = vmatpush1.msra.mxu0 0.0
  %147 = vmatprep.subr.mxu0 0.0
  %148 = vmatpush1.msra.mxu0 0.0
  %149 = vmatprep.subr.mxu0 0.0
  %150 = vmatpush1.msra.mxu0 0.0
  %151 = vmatprep.subr.mxu0 0.0
  %152 = vmatpush1.msra.mxu0 0.0
  %153 = vmatprep.subr.mxu0 0.0
  %154 = vmatpush1.msra.mxu0 0.0
  %155 = vmatprep.subr.mxu0 0.0
  %156 = vmatpush1.msra.mxu0 0.0
  %157 = vmatprep.subr.mxu0 0.0
  %158 = vmatpush1.msra.mxu0 0.0
  %159 = vmatprep.subr.mxu0 0.0
  %160 = vmatpush1.msra.mxu0 0.0
  %161 = vmatprep.subr.mxu0 0.0
  %162 = vmatpush1.msra.mxu0 0.0
  %163 = vmatprep.subr.mxu0 0.0
  %164 = vmatpush1.msra.mxu0 0.0
  %165 = vmatprep.mubr.f32.mxu0 0.0
  %166 = vmatmul.mubr.f32.gmra.mrb[0].mxu0 %v93
  %v167 = vpop.f32.mrb[0].mxu0
  %v168 = vadd.f32 0.0, %v167
  %v169 = vpop.f32.mrb[0].mxu0
  %170 = vmatprep.mubr.f32.mxu0 0.0
  %171 = vmatmul.mubr.f32.gmra.mrb[0].mxu0 %v95
  %v172 = vpop.f32.mrb[0].mxu0
  %v173 = vadd.f32 0.0, %v172
  %v174 = vpop.f32.mrb[0].mxu0
  %175 = vmatprep.mubr.f32.mxu0 0.0
  %176 = vmatmul.mubr.f32.gmra.mrb[0].mxu0 %v97
  %v177 = vpop.f32.mrb[0].mxu0
  %v178 = vadd.f32 0.0, %v177
  %v179 = vpop.f32.mrb[0].mxu0
  %180 = vmatprep.mubr.f32.mxu0 0.0
  %181 = vmatmul.mubr.f32.gmra.mrb[0].mxu0 %v99
  %v182 = vpop.f32.mrb[0].mxu0
  %v183 = vadd.f32 0.0, %v182
  %v184 = vpop.f32.mrb[0].mxu0
  %185 = vdwg.mxu0
  %v186 = vsel %vm92, %v56, 0
  %v188 = vsel %vm92, %v48, 0
  %v190 = vsel %vm92, %v57, 0
  %v192 = vsel %vm92, %v51, 0
  %194 = vmatprep.subr.mxu0 0.0
  %195 = vmatpush1.msra.mxu0 %v60
  %196 = vmatprep.subr.mxu0 0.0
  %197 = vmatpush1.msra.mxu0 %v61
  %198 = vmatprep.subr.mxu0 0.0
  %199 = vmatpush1.msra.mxu0 %v62
  %200 = vmatprep.subr.mxu0 0.0
  %201 = vmatpush1.msra.mxu0 %v63
  %202 = vmatprep.subr.mxu0 0.0
  %203 = vmatpush1.msra.mxu0 %v64
  %204 = vmatprep.subr.mxu0 0.0
  %205 = vmatpush1.msra.mxu0 %v65
  %206 = vmatprep.subr.mxu0 0.0
  %207 = vmatpush1.msra.mxu0 %v66
  %208 = vmatprep.subr.mxu0 0.0
  %209 = vmatpush1.msra.mxu0 %v67
  %210 = vmatprep.subr.mxu0 0.0
  %211 = vmatpush1.msra.mxu0 0.0
  %212 = vmatprep.subr.mxu0 0.0
  %213 = vmatpush1.msra.mxu0 0.0
  %214 = vmatprep.subr.mxu0 0.0
  %215 = vmatpush1.msra.mxu0 0.0
  %216 = vmatprep.subr.mxu0 0.0
  %217 = vmatpush1.msra.mxu0 0.0
  %218 = vmatprep.subr.mxu0 0.0
  %219 = vmatpush1.msra.mxu0 0.0
  %220 = vmatprep.subr.mxu0 0.0
  %221 = vmatpush1.msra.mxu0 0.0
  %222 = vmatprep.subr.mxu0 0.0
  %223 = vmatpush1.msra.mxu0 0.0
  %224 = vmatprep.subr.mxu0 0.0
  %225 = vmatpush1.msra.mxu0 0.0
  %226 = vmatprep.subr.mxu0 0.0
  %227 = vmatpush1.msra.mxu0 0.0
  %228 = vmatprep.subr.mxu0 0.0
  %229 = vmatpush1.msra.mxu0 0.0
  %230 = vmatprep.subr.mxu0 0.0
  %231 = vmatpush1.msra.mxu0 0.0
  %232 = vmatprep.subr.mxu0 0.0
  %233 = vmatpush1.msra.mxu0 0.0
  %234 = vmatprep.subr.mxu0 0.0
  %235 = vmatpush1.msra.mxu0 0.0
  %236 = vmatprep.subr.mxu0 0.0
  %237 = vmatpush1.msra.mxu0 0.0
  %238 = vmatprep.subr.mxu0 0.0
  %239 = vmatpush1.msra.mxu0 0.0
  %240 = vmatprep.subr.mxu0 0.0
  %241 = vmatpush1.msra.mxu0 0.0
  %242 = vmatprep.subr.mxu0 0.0
  %243 = vmatpush1.msra.mxu0 0.0
  %244 = vmatprep.subr.mxu0 0.0
  %245 = vmatpush1.msra.mxu0 0.0
  %246 = vmatprep.subr.mxu0 0.0
  %247 = vmatpush1.msra.mxu0 0.0
  %248 = vmatprep.subr.mxu0 0.0
  %249 = vmatpush1.msra.mxu0 0.0
  %250 = vmatprep.subr.mxu0 0.0
  %251 = vmatpush1.msra.mxu0 0.0
  %252 = vmatprep.subr.mxu0 0.0
  %253 = vmatpush1.msra.mxu0 0.0
  %254 = vmatprep.subr.mxu0 0.0
  %255 = vmatpush1.msra.mxu0 0.0
  %256 = vmatprep.subr.mxu0 0.0
  %257 = vmatpush1.msra.mxu0 0.0
  %258 = vmatprep.mubr.f32.mxu0 0.0
  %259 = vmatmul.mubr.f32.gmra.mrb[0].mxu0 %v186
  %v260 = vpop.f32.mrb[0].mxu0
  %v261 = vadd.f32 %v168, %v260
  %v262 = vpop.f32.mrb[0].mxu0
  %263 = vmatprep.mubr.f32.mxu0 0.0
  %264 = vmatmul.mubr.f32.gmra.mrb[0].mxu0 %v188
  %v265 = vpop.f32.mrb[0].mxu0
  %v266 = vadd.f32 %v173, %v265
  %v267 = vpop.f32.mrb[0].mxu0
  %268 = vmatprep.mubr.f32.mxu0 0.0
  %269 = vmatmul.mubr.f32.gmra.mrb[0].mxu0 %v190
  %v270 = vpop.f32.mrb[0].mxu0
  %v271 = vadd.f32 %v178, %v270
  %v272 = vpop.f32.mrb[0].mxu0
  %273 = vmatprep.mubr.f32.mxu0 0.0
  %274 = vmatmul.mubr.f32.gmra.mrb[0].mxu0 %v192
  %v275 = vpop.f32.mrb[0].mxu0
  %v276 = vadd.f32 %v183, %v275
  %v277 = vpop.f32.mrb[0].mxu0
  %278 = vdwg.mxu0
  %vm279 = vcmask 1045504
  %v280 = vrot.slane %v56, 2
  %v281 = vrot.slane %v48, 2
  %v282 = vsel %vm279, %v280, %v281
  %v283 = vrot.slane %v58, 2
  %v284 = vsel %vm279, %v281, %v283
  %v285 = vrot.slane %v57, 2
  %v286 = vrot.slane %v51, 2
  %v287 = vsel %vm279, %v285, %v286
  %v288 = vrot.slane %v59, 2
  %v289 = vsel %vm279, %v286, %v288
  %s290 = scalar_lea.vmem %s1, 128
  %v291 = vld [vmem:[%s290] sm:$0xff]
  %v292 = vld [vmem:[%s290 + $0x8] sm:$0xff]
  %v293 = vld [vmem:[%s290 + $0x10] sm:$0xff]
  %v294 = vld [vmem:[%s290 + $0x18] sm:$0xff]
  %v295 = vld [vmem:[%s290 + $0x20] sm:$0xff]
  %v296 = vld [vmem:[%s290 + $0x28] sm:$0xff]
  %v297 = vld [vmem:[%s290 + $0x30] sm:$0xff]
  %v298 = vld [vmem:[%s290 + $0x38] sm:$0xff]
  %v299 = vsel %vm92, %v282, 0
  %v301 = vsel %vm92, %v284, 0
  %v303 = vsel %vm92, %v287, 0
  %v305 = vsel %vm92, %v289, 0
  %307 = vmatprep.subr.mxu0 0.0
  %308 = vmatpush1.msra.mxu0 %v291
  %309 = vmatprep.subr.mxu0 0.0
  %310 = vmatpush1.msra.mxu0 %v292
  %311 = vmatprep.subr.mxu0 0.0
  %312 = vmatpush1.msra.mxu0 %v293
  %313 = vmatprep.subr.mxu0 0.0
  %314 = vmatpush1.msra.mxu0 %v294
  %315 = vmatprep.subr.mxu0 0.0
  %316 = vmatpush1.msra.mxu0 %v295
  %317 = vmatprep.subr.mxu0 0.0
  %318 = vmatpush1.msra.mxu0 %v296
  %319 = vmatprep.subr.mxu0 0.0
  %320 = vmatpush1.msra.mxu0 %v297
  %321 = vmatprep.subr.mxu0 0.0
  %322 = vmatpush1.msra.mxu0 %v298
  %323 = vmatprep.subr.mxu0 0.0
  %324 = vmatpush1.msra.mxu0 0.0
  %325 = vmatprep.subr.mxu0 0.0
  %326 = vmatpush1.msra.mxu0 0.0
  %327 = vmatprep.subr.mxu0 0.0
  %328 = vmatpush1.msra.mxu0 0.0
  %329 = vmatprep.subr.mxu0 0.0
  %330 = vmatpush1.msra.mxu0 0.0
  %331 = vmatprep.subr.mxu0 0.0
  %332 = vmatpush1.msra.mxu0 0.0
  %333 = vmatprep.subr.mxu0 0.0
  %334 = vmatpush1.msra.mxu0 0.0
  %335 = vmatprep.subr.mxu0 0.0
  %336 = vmatpush1.msra.mxu0 0.0
  %337 = vmatprep.subr.mxu0 0.0
  %338 = vmatpush1.msra.mxu0 0.0
  %339 = vmatprep.subr.mxu0 0.0
  %340 = vmatpush1.msra.mxu0 0.0
  %341 = vmatprep.subr.mxu0 0.0
  %342 = vmatpush1.msra.mxu0 0.0
  %343 = vmatprep.subr.mxu0 0.0
  %344 = vmatpush1.msra.mxu0 0.0
  %345 = vmatprep.subr.mxu0 0.0
  %346 = vmatpush1.msra.mxu0 0.0
  %347 = vmatprep.subr.mxu0 0.0
  %348 = vmatpush1.msra.mxu0 0.0
  %349 = vmatprep.subr.mxu0 0.0
  %350 = vmatpush1.msra.mxu0 0.0
  %351 = vmatprep.subr.mxu0 0.0
  %352 = vmatpush1.msra.mxu0 0.0
  %353 = vmatprep.subr.mxu0 0.0
  %354 = vmatpush1.msra.mxu0 0.0
  %355 = vmatprep.subr.mxu0 0.0
  %356 = vmatpush1.msra.mxu0 0.0
  %357 = vmatprep.subr.mxu0 0.0
  %358 = vmatpush1.msra.mxu0 0.0
  %359 = vmatprep.subr.mxu0 0.0
  %360 = vmatpush1.msra.mxu0 0.0
  %361 = vmatprep.subr.mxu0 0.0
  %362 = vmatpush1.msra.mxu0 0.0
  %363 = vmatprep.subr.mxu0 0.0
  %364 = vmatpush1.msra.mxu0 0.0
  %365 = vmatprep.subr.mxu0 0.0
  %366 = vmatpush1.msra.mxu0 0.0
  %367 = vmatprep.subr.mxu0 0.0
  %368 = vmatpush1.msra.mxu0 0.0
  %369 = vmatprep.subr.mxu0 0.0
  %370 = vmatpush1.msra.mxu0 0.0
  %371 = vmatprep.mubr.f32.mxu0 0.0
  %372 = vmatmul.mubr.f32.gmra.mrb[0].mxu0 %v299
  %v373 = vpop.f32.mrb[0].mxu0
  %v374 = vadd.f32 0.0, %v373
  %v375 = vpop.f32.mrb[0].mxu0
  %376 = vmatprep.mubr.f32.mxu0 0.0
  %377 = vmatmul.mubr.f32.gmra.mrb[0].mxu0 %v301
  %v378 = vpop.f32.mrb[0].mxu0
  %v379 = vadd.f32 0.0, %v378
  %v380 = vpop.f32.mrb[0].mxu0
  %381 = vmatprep.mubr.f32.mxu0 0.0
  %382 = vmatmul.mubr.f32.gmra.mrb[0].mxu0 %v303
  %v383 = vpop.f32.mrb[0].mxu0
  %v384 = vadd.f32 0.0, %v383
  %v385 = vpop.f32.mrb[0].mxu0
  %386 = vmatprep.mubr.f32.mxu0 0.0
  %387 = vmatmul.mubr.f32.gmra.mrb[0].mxu0 %v305
  %v388 = vpop.f32.mrb[0].mxu0
  %v389 = vadd.f32 0.0, %v388
  %v390 = vpop.f32.mrb[0].mxu0
  %391 = vdwg.mxu0
  %v392 = vadd.f32 %v261, %v374
  %v393 = vadd.f32 %v266, %v379
  %v394 = vadd.f32 %v271, %v384
  %v395 = vadd.f32 %v276, %v389
  %v396 = vld [vmem:[%s3] sm:$0x1]
  %v397 = vld [vmem:[%s4] sm:$0x1]
  %v399 = vsel %vm92, %v392, 0
  %v402 = vsel %vm92, %v393, 0
  %v405 = vsel %vm92, %v394, 0
  %v408 = vsel %vm92, %v395, 0
  %410 = vmatprep.subr.mxu0 0.0
  %411 = vmatpush1.msra.mxu0 %v33
  %412 = vmatprep.subr.mxu0 0.0
  %413 = vmatpush1.msra.mxu0 %v34
  %414 = vmatprep.subr.mxu0 0.0
  %415 = vmatpush1.msra.mxu0 %v35
  %416 = vmatprep.subr.mxu0 0.0
  %417 = vmatpush1.msra.mxu0 %v36
  %418 = vmatprep.subr.mxu0 0.0
  %419 = vmatpush1.msra.mxu0 %v37
  %420 = vmatprep.subr.mxu0 0.0
  %421 = vmatpush1.msra.mxu0 %v38
  %422 = vmatprep.subr.mxu0 0.0
  %423 = vmatpush1.msra.mxu0 %v39
  %424 = vmatprep.subr.mxu0 0.0
  %425 = vmatpush1.msra.mxu0 %v40
  %426 = vmatprep.subr.mxu0 0.0
  %427 = vmatpush1.msra.mxu0 0.0
  %428 = vmatprep.subr.mxu0 0.0
  %429 = vmatpush1.msra.mxu0 0.0
  %430 = vmatprep.subr.mxu0 0.0
  %431 = vmatpush1.msra.mxu0 0.0
  %432 = vmatprep.subr.mxu0 0.0
  %433 = vmatpush1.msra.mxu0 0.0
  %434 = vmatprep.subr.mxu0 0.0
  %435 = vmatpush1.msra.mxu0 0.0
  %436 = vmatprep.subr.mxu0 0.0
  %437 = vmatpush1.msra.mxu0 0.0
  %438 = vmatprep.subr.mxu0 0.0
  %439 = vmatpush1.msra.mxu0 0.0
  %440 = vmatprep.subr.mxu0 0.0
  %441 = vmatpush1.msra.mxu0 0.0
  %442 = vmatprep.subr.mxu0 0.0
  %443 = vmatpush1.msra.mxu0 0.0
  %444 = vmatprep.subr.mxu0 0.0
  %445 = vmatpush1.msra.mxu0 0.0
  %446 = vmatprep.subr.mxu0 0.0
  %447 = vmatpush1.msra.mxu0 0.0
  %448 = vmatprep.subr.mxu0 0.0
  %449 = vmatpush1.msra.mxu0 0.0
  %450 = vmatprep.subr.mxu0 0.0
  %451 = vmatpush1.msra.mxu0 0.0
  %452 = vmatprep.subr.mxu0 0.0
  %453 = vmatpush1.msra.mxu0 0.0
  %454 = vmatprep.subr.mxu0 0.0
  %455 = vmatpush1.msra.mxu0 0.0
  %456 = vmatprep.subr.mxu0 0.0
  %457 = vmatpush1.msra.mxu0 0.0
  %458 = vmatprep.subr.mxu0 0.0
  %459 = vmatpush1.msra.mxu0 0.0
  %460 = vmatprep.subr.mxu0 0.0
  %461 = vmatpush1.msra.mxu0 0.0
  %462 = vmatprep.subr.mxu0 0.0
  %463 = vmatpush1.msra.mxu0 0.0
  %464 = vmatprep.subr.mxu0 0.0
  %465 = vmatpush1.msra.mxu0 0.0
  %466 = vmatprep.subr.mxu0 0.0
  %467 = vmatpush1.msra.mxu0 0.0
  %468 = vmatprep.subr.mxu0 0.0
  %469 = vmatpush1.msra.mxu0 0.0
  %470 = vmatprep.subr.mxu0 0.0
  %471 = vmatpush1.msra.mxu0 0.0
  %472 = vmatprep.subr.mxu0 0.0
  %473 = vmatpush1.msra.mxu0 0.0
  %474 = vmatprep.mubr.f32.mxu0 0.0
  %475 = vmatmul.mubr.f32.gmra.mrb[0].mxu0 %v399
  %v476 = vpop.f32.mrb[0].mxu0
  %v477 = vadd.f32 0.0, %v476
  %v478 = vpop.f32.mrb[0].mxu0
  %479 = vmatprep.mubr.f32.mxu0 0.0
  %480 = vmatmul.mubr.f32.gmra.mrb[0].mxu0 %v402
  %v481 = vpop.f32.mrb[0].mxu0
  %v482 = vadd.f32 0.0, %v481
  %v483 = vpop.f32.mrb[0].mxu0
  %484 = vmatprep.mubr.f32.mxu0 0.0
  %485 = vmatmul.mubr.f32.gmra.mrb[0].mxu0 %v405
  %v486 = vpop.f32.mrb[0].mxu0
  %v487 = vadd.f32 0.0, %v486
  %v488 = vpop.f32.mrb[0].mxu0
  %489 = vmatprep.mubr.f32.mxu0 0.0
  %490 = vmatmul.mubr.f32.gmra.mrb[0].mxu0 %v408
  %v491 = vpop.f32.mrb[0].mxu0
  %v492 = vadd.f32 0.0, %v491
  %v493 = vpop.f32.mrb[0].mxu0
  %494 = vdwg.mxu0
  %v495 = vmul.f32 %v392, %v392
  %v496 = vmul.f32 %v393, %v393
  %v497 = vmul.f32 %v394, %v394
  %v498 = vmul.f32 %v395, %v395
  %v500 = vsel %vm92, %v495, 0
  %v503 = vsel %vm92, %v496, 0
  %v506 = vsel %vm92, %v497, 0
  %v509 = vsel %vm92, %v498, 0
  %511 = vmatprep.subr.mxu0 0.0
  %512 = vmatpush1.msra.mxu0 %v33
  %513 = vmatprep.subr.mxu0 0.0
  %514 = vmatpush1.msra.mxu0 %v34
  %515 = vmatprep.subr.mxu0 0.0
  %516 = vmatpush1.msra.mxu0 %v35
  %517 = vmatprep.subr.mxu0 0.0
  %518 = vmatpush1.msra.mxu0 %v36
  %519 = vmatprep.subr.mxu0 0.0
  %520 = vmatpush1.msra.mxu0 %v37
  %521 = vmatprep.subr.mxu0 0.0
  %522 = vmatpush1.msra.mxu0 %v38
  %523 = vmatprep.subr.mxu0 0.0
  %524 = vmatpush1.msra.mxu0 %v39
  %525 = vmatprep.subr.mxu0 0.0
  %526 = vmatpush1.msra.mxu0 %v40
  %527 = vmatprep.subr.mxu0 0.0
  %528 = vmatpush1.msra.mxu0 0.0
  %529 = vmatprep.subr.mxu0 0.0
  %530 = vmatpush1.msra.mxu0 0.0
  %531 = vmatprep.subr.mxu0 0.0
  %532 = vmatpush1.msra.mxu0 0.0
  %533 = vmatprep.subr.mxu0 0.0
  %534 = vmatpush1.msra.mxu0 0.0
  %535 = vmatprep.subr.mxu0 0.0
  %536 = vmatpush1.msra.mxu0 0.0
  %537 = vmatprep.subr.mxu0 0.0
  %538 = vmatpush1.msra.mxu0 0.0
  %539 = vmatprep.subr.mxu0 0.0
  %540 = vmatpush1.msra.mxu0 0.0
  %541 = vmatprep.subr.mxu0 0.0
  %542 = vmatpush1.msra.mxu0 0.0
  %543 = vmatprep.subr.mxu0 0.0
  %544 = vmatpush1.msra.mxu0 0.0
  %545 = vmatprep.subr.mxu0 0.0
  %546 = vmatpush1.msra.mxu0 0.0
  %547 = vmatprep.subr.mxu0 0.0
  %548 = vmatpush1.msra.mxu0 0.0
  %549 = vmatprep.subr.mxu0 0.0
  %550 = vmatpush1.msra.mxu0 0.0
  %551 = vmatprep.subr.mxu0 0.0
  %552 = vmatpush1.msra.mxu0 0.0
  %553 = vmatprep.subr.mxu0 0.0
  %554 = vmatpush1.msra.mxu0 0.0
  %555 = vmatprep.subr.mxu0 0.0
  %556 = vmatpush1.msra.mxu0 0.0
  %557 = vmatprep.subr.mxu0 0.0
  %558 = vmatpush1.msra.mxu0 0.0
  %559 = vmatprep.subr.mxu0 0.0
  %560 = vmatpush1.msra.mxu0 0.0
  %561 = vmatprep.subr.mxu0 0.0
  %562 = vmatpush1.msra.mxu0 0.0
  %563 = vmatprep.subr.mxu0 0.0
  %564 = vmatpush1.msra.mxu0 0.0
  %565 = vmatprep.subr.mxu0 0.0
  %566 = vmatpush1.msra.mxu0 0.0
  %567 = vmatprep.subr.mxu0 0.0
  %568 = vmatpush1.msra.mxu0 0.0
  %569 = vmatprep.subr.mxu0 0.0
  %570 = vmatpush1.msra.mxu0 0.0
  %571 = vmatprep.subr.mxu0 0.0
  %572 = vmatpush1.msra.mxu0 0.0
  %573 = vmatprep.subr.mxu0 0.0
  %574 = vmatpush1.msra.mxu0 0.0
  %575 = vmatprep.mubr.f32.mxu0 0.0
  %576 = vmatmul.mubr.f32.gmra.mrb[0].mxu0 %v500
  %v577 = vpop.f32.mrb[0].mxu0
  %v578 = vadd.f32 0.0, %v577
  %v579 = vpop.f32.mrb[0].mxu0
  %580 = vmatprep.mubr.f32.mxu0 0.0
  %581 = vmatmul.mubr.f32.gmra.mrb[0].mxu0 %v503
  %v582 = vpop.f32.mrb[0].mxu0
  %v583 = vadd.f32 0.0, %v582
  %v584 = vpop.f32.mrb[0].mxu0
  %585 = vmatprep.mubr.f32.mxu0 0.0
  %586 = vmatmul.mubr.f32.gmra.mrb[0].mxu0 %v506
  %v587 = vpop.f32.mrb[0].mxu0
  %v588 = vadd.f32 0.0, %v587
  %v589 = vpop.f32.mrb[0].mxu0
  %590 = vmatprep.mubr.f32.mxu0 0.0
  %591 = vmatmul.mubr.f32.gmra.mrb[0].mxu0 %v509
  %v592 = vpop.f32.mrb[0].mxu0
  %v593 = vadd.f32 0.0, %v592
  %v594 = vpop.f32.mrb[0].mxu0
  %595 = vdwg.mxu0
  %v596 = vsel %vm92, %v477, 0.0
  %v597 = vsel %vm92, %v482, 0.0
  %v598 = vadd.f32 %v596, %v597
  %v599 = vsel %vm92, %v487, 0.0
  %v600 = vadd.f32 %v598, %v599
  %v601 = vsel %vm92, %v492, 0.0
  %v602 = vadd.f32 %v600, %v601
  %v603 = vrot.slane %v602, 4
  %v604 = vadd.f32 %v602, %v603
  %v605 = vrot.slane %v604, 2
  %v606 = vadd.f32 %v604, %v605
  %v607 = vrot.slane %v606, 1
  %v608 = vadd.f32 %v606, %v607
  %v609 = vmul.f32 %v608, 0.001953125
  %v610 = vsel %vm92, %v578, 0.0
  %v611 = vsel %vm92, %v583, 0.0
  %v612 = vadd.f32 %v610, %v611
  %v613 = vsel %vm92, %v588, 0.0
  %v614 = vadd.f32 %v612, %v613
  %v615 = vsel %vm92, %v593, 0.0
  %v616 = vadd.f32 %v614, %v615
  %v617 = vrot.slane %v616, 4
  %v618 = vadd.f32 %v616, %v617
  %v619 = vrot.slane %v618, 2
  %v620 = vadd.f32 %v618, %v619
  %v621 = vrot.slane %v620, 1
  %v622 = vadd.f32 %v620, %v621
  %v623 = vmul.f32 %v622, 0.001953125
  %v624 = vmul.f32 %v609, %v609
  %v625 = vsub.f32 %v623, %v624
  %v626 = vsub.f32 %v392, %v609
  %v627 = vsub.f32 %v393, %v609
  %v628 = vsub.f32 %v394, %v609
  %v629 = vsub.f32 %v395, %v609
  %v630 = vadd.f32 %v625, 1e-05
  %v631 = vrsqrt.pop %v630
  %v632 = vmul.f32 %v626, %v631
  %v633 = vmul.f32 %v627, %v631
  %v634 = vmul.f32 %v628, %v631
  %v635 = vmul.f32 %v629, %v631
  %v637 = vlaneseq
  %v638 = vshrl.u32 %v637, 7
  %v639 = vsub.s32 0, %v638
  %v640 = vrot.slane %v396, %v639
  %v642 = vmul.f32 %v632, %v640
  %v643 = vmul.f32 %v633, %v640
  %v644 = vmul.f32 %v634, %v640
  %v645 = vmul.f32 %v635, %v640
  %v647 = vlaneseq
  %v648 = vshrl.u32 %v647, 7
  %v649 = vsub.s32 0, %v648
  %v650 = vrot.slane %v397, %v649
  %v652 = vadd.f32 %v642, %v650
  %v653 = vadd.f32 %v643, %v650
  %v654 = vadd.f32 %v644, %v650
  %v655 = vadd.f32 %v645, %v650
  %v656 = vmax.f32 %v652, 0.0
  %v657 = vmax.f32 %v653, 0.0
  %v658 = vmax.f32 %v654, 0.0
  %v659 = vmax.f32 %v655, 0.0
  %v664 = vrot.slane %v656, 7
  %v665 = vrot.slane %v657, 7
  %v666 = vsel %vm45, %v664, %v665
  %v667 = vrot.slane %v658, 7
  %v668 = vrot.slane %v659, 7
  %v669 = vsel %vm45, %v667, %v668
  %v674 = vsel %vm45, 0.0, %v664
  %v675 = vsel %vm45, 0.0, %v667
  %v676 = vsel %vm45, %v665, 0.0
  %v677 = vsel %vm45, %v668, 0.0
  %v678 = vld [vmem:[%s2] sm:$0xff]
  %v679 = vld [vmem:[%s2 + $0x8] sm:$0xff]
  %v680 = vld [vmem:[%s2 + $0x10] sm:$0xff]
  %v681 = vld [vmem:[%s2 + $0x18] sm:$0xff]
  %v682 = vld [vmem:[%s2 + $0x20] sm:$0xff]
  %v683 = vld [vmem:[%s2 + $0x28] sm:$0xff]
  %v684 = vld [vmem:[%s2 + $0x30] sm:$0xff]
  %v685 = vld [vmem:[%s2 + $0x38] sm:$0xff]
  %v690 = vrot.slane %v674, 1
  %v691 = vrot.slane %v666, 1
  %v692 = vsel %vm72, %v690, %v691
  %v693 = vrot.slane %v676, 1
  %v694 = vsel %vm72, %v691, %v693
  %v695 = vrot.slane %v675, 1
  %v696 = vrot.slane %v669, 1
  %v697 = vsel %vm72, %v695, %v696
  %v698 = vrot.slane %v677, 1
  %v699 = vsel %vm72, %v696, %v698
  %s700 = scalar_lea.vmem %s2, 64
  %v701 = vld [vmem:[%s700] sm:$0xff]
  %v702 = vld [vmem:[%s700 + $0x8] sm:$0xff]
  %v703 = vld [vmem:[%s700 + $0x10] sm:$0xff]
  %v704 = vld [vmem:[%s700 + $0x18] sm:$0xff]
  %v705 = vld [vmem:[%s700 + $0x20] sm:$0xff]
  %v706 = vld [vmem:[%s700 + $0x28] sm:$0xff]
  %v707 = vld [vmem:[%s700 + $0x30] sm:$0xff]
  %v708 = vld [vmem:[%s700 + $0x38] sm:$0xff]
  %v709 = vsel %vm92, %v692, 0
  %v711 = vsel %vm92, %v694, 0
  %v713 = vsel %vm92, %v697, 0
  %v715 = vsel %vm92, %v699, 0
  %717 = vmatprep.subr.mxu0 0.0
  %718 = vmatpush1.msra.mxu0 %v701
  %719 = vmatprep.subr.mxu0 0.0
  %720 = vmatpush1.msra.mxu0 %v702
  %721 = vmatprep.subr.mxu0 0.0
  %722 = vmatpush1.msra.mxu0 %v703
  %723 = vmatprep.subr.mxu0 0.0
  %724 = vmatpush1.msra.mxu0 %v704
  %725 = vmatprep.subr.mxu0 0.0
  %726 = vmatpush1.msra.mxu0 %v705
  %727 = vmatprep.subr.mxu0 0.0
  %728 = vmatpush1.msra.mxu0 %v706
  %729 = vmatprep.subr.mxu0 0.0
  %730 = vmatpush1.msra.mxu0 %v707
  %731 = vmatprep.subr.mxu0 0.0
  %732 = vmatpush1.msra.mxu0 %v708
  %733 = vmatprep.subr.mxu0 0.0
  %734 = vmatpush1.msra.mxu0 0.0
  %735 = vmatprep.subr.mxu0 0.0
  %736 = vmatpush1.msra.mxu0 0.0
  %737 = vmatprep.subr.mxu0 0.0
  %738 = vmatpush1.msra.mxu0 0.0
  %739 = vmatprep.subr.mxu0 0.0
  %740 = vmatpush1.msra.mxu0 0.0
  %741 = vmatprep.subr.mxu0 0.0
  %742 = vmatpush1.msra.mxu0 0.0
  %743 = vmatprep.subr.mxu0 0.0
  %744 = vmatpush1.msra.mxu0 0.0
  %745 = vmatprep.subr.mxu0 0.0
  %746 = vmatpush1.msra.mxu0 0.0
  %747 = vmatprep.subr.mxu0 0.0
  %748 = vmatpush1.msra.mxu0 0.0
  %749 = vmatprep.subr.mxu0 0.0
  %750 = vmatpush1.msra.mxu0 0.0
  %751 = vmatprep.subr.mxu0 0.0
  %752 = vmatpush1.msra.mxu0 0.0
  %753 = vmatprep.subr.mxu0 0.0
  %754 = vmatpush1.msra.mxu0 0.0
  %755 = vmatprep.subr.mxu0 0.0
  %756 = vmatpush1.msra.mxu0 0.0
  %757 = vmatprep.subr.mxu0 0.0
  %758 = vmatpush1.msra.mxu0 0.0
  %759 = vmatprep.subr.mxu0 0.0
  %760 = vmatpush1.msra.mxu0 0.0
  %761 = vmatprep.subr.mxu0 0.0
  %762 = vmatpush1.msra.mxu0 0.0
  %763 = vmatprep.subr.mxu0 0.0
  %764 = vmatpush1.msra.mxu0 0.0
  %765 = vmatprep.subr.mxu0 0.0
  %766 = vmatpush1.msra.mxu0 0.0
  %767 = vmatprep.subr.mxu0 0.0
  %768 = vmatpush1.msra.mxu0 0.0
  %769 = vmatprep.subr.mxu0 0.0
  %770 = vmatpush1.msra.mxu0 0.0
  %771 = vmatprep.subr.mxu0 0.0
  %772 = vmatpush1.msra.mxu0 0.0
  %773 = vmatprep.subr.mxu0 0.0
  %774 = vmatpush1.msra.mxu0 0.0
  %775 = vmatprep.subr.mxu0 0.0
  %776 = vmatpush1.msra.mxu0 0.0
  %777 = vmatprep.subr.mxu0 0.0
  %778 = vmatpush1.msra.mxu0 0.0
  %779 = vmatprep.subr.mxu0 0.0
  %780 = vmatpush1.msra.mxu0 0.0
  %781 = vmatprep.mubr.f32.mxu0 0.0
  %782 = vmatmul.mubr.f32.gmra.mrb[0].mxu0 %v709
  %v783 = vpop.f32.mrb[0].mxu0
  %v784 = vadd.f32 0.0, %v783
  %v785 = vpop.f32.mrb[0].mxu0
  %786 = vmatprep.mubr.f32.mxu0 0.0
  %787 = vmatmul.mubr.f32.gmra.mrb[0].mxu0 %v711
  %v788 = vpop.f32.mrb[0].mxu0
  %v789 = vadd.f32 0.0, %v788
  %v790 = vpop.f32.mrb[0].mxu0
  %791 = vmatprep.mubr.f32.mxu0 0.0
  %792 = vmatmul.mubr.f32.gmra.mrb[0].mxu0 %v713
  %v793 = vpop.f32.mrb[0].mxu0
  %v794 = vadd.f32 0.0, %v793
  %v795 = vpop.f32.mrb[0].mxu0
  %796 = vmatprep.mubr.f32.mxu0 0.0
  %797 = vmatmul.mubr.f32.gmra.mrb[0].mxu0 %v715
  %v798 = vpop.f32.mrb[0].mxu0
  %v799 = vadd.f32 0.0, %v798
  %v800 = vpop.f32.mrb[0].mxu0
  %801 = vdwg.mxu0
  %v802 = vsel %vm92, %v674, 0
  %v804 = vsel %vm92, %v666, 0
  %v806 = vsel %vm92, %v675, 0
  %v808 = vsel %vm92, %v669, 0
  %810 = vmatprep.subr.mxu0 0.0
  %811 = vmatpush1.msra.mxu0 %v678
  %812 = vmatprep.subr.mxu0 0.0
  %813 = vmatpush1.msra.mxu0 %v679
  %814 = vmatprep.subr.mxu0 0.0
  %815 = vmatpush1.msra.mxu0 %v680
  %816 = vmatprep.subr.mxu0 0.0
  %817 = vmatpush1.msra.mxu0 %v681
  %818 = vmatprep.subr.mxu0 0.0
  %819 = vmatpush1.msra.mxu0 %v682
  %820 = vmatprep.subr.mxu0 0.0
  %821 = vmatpush1.msra.mxu0 %v683
  %822 = vmatprep.subr.mxu0 0.0
  %823 = vmatpush1.msra.mxu0 %v684
  %824 = vmatprep.subr.mxu0 0.0
  %825 = vmatpush1.msra.mxu0 %v685
  %826 = vmatprep.subr.mxu0 0.0
  %827 = vmatpush1.msra.mxu0 0.0
  %828 = vmatprep.subr.mxu0 0.0
  %829 = vmatpush1.msra.mxu0 0.0
  %830 = vmatprep.subr.mxu0 0.0
  %831 = vmatpush1.msra.mxu0 0.0
  %832 = vmatprep.subr.mxu0 0.0
  %833 = vmatpush1.msra.mxu0 0.0
  %834 = vmatprep.subr.mxu0 0.0
  %835 = vmatpush1.msra.mxu0 0.0
  %836 = vmatprep.subr.mxu0 0.0
  %837 = vmatpush1.msra.mxu0 0.0
  %838 = vmatprep.subr.mxu0 0.0
  %839 = vmatpush1.msra.mxu0 0.0
  %840 = vmatprep.subr.mxu0 0.0
  %841 = vmatpush1.msra.mxu0 0.0
  %842 = vmatprep.subr.mxu0 0.0
  %843 = vmatpush1.msra.mxu0 0.0
  %844 = vmatprep.subr.mxu0 0.0
  %845 = vmatpush1.msra.mxu0 0.0
  %846 = vmatprep.subr.mxu0 0.0
  %847 = vmatpush1.msra.mxu0 0.0
  %848 = vmatprep.subr.mxu0 0.0
  %849 = vmatpush1.msra.mxu0 0.0
  %850 = vmatprep.subr.mxu0 0.0
  %851 = vmatpush1.msra.mxu0 0.0
  %852 = vmatprep.subr.mxu0 0.0
  %853 = vmatpush1.msra.mxu0 0.0
  %854 = vmatprep.subr.mxu0 0.0
  %855 = vmatpush1.msra.mxu0 0.0
  %856 = vmatprep.subr.mxu0 0.0
  %857 = vmatpush1.msra.mxu0 0.0
  %858 = vmatprep.subr.mxu0 0.0
  %859 = vmatpush1.msra.mxu0 0.0
  %860 = vmatprep.subr.mxu0 0.0
  %861 = vmatpush1.msra.mxu0 0.0
  %862 = vmatprep.subr.mxu0 0.0
  %863 = vmatpush1.msra.mxu0 0.0
  %864 = vmatprep.subr.mxu0 0.0
  %865 = vmatpush1.msra.mxu0 0.0
  %866 = vmatprep.subr.mxu0 0.0
  %867 = vmatpush1.msra.mxu0 0.0
  %868 = vmatprep.subr.mxu0 0.0
  %869 = vmatpush1.msra.mxu0 0.0
  %870 = vmatprep.subr.mxu0 0.0
  %871 = vmatpush1.msra.mxu0 0.0
  %872 = vmatprep.subr.mxu0 0.0
  %873 = vmatpush1.msra.mxu0 0.0
  %874 = vmatprep.mubr.f32.mxu0 0.0
  %875 = vmatmul.mubr.f32.gmra.mrb[0].mxu0 %v802
  %v876 = vpop.f32.mrb[0].mxu0
  %v877 = vadd.f32 %v784, %v876
  %v878 = vpop.f32.mrb[0].mxu0
  %879 = vmatprep.mubr.f32.mxu0 0.0
  %880 = vmatmul.mubr.f32.gmra.mrb[0].mxu0 %v804
  %v881 = vpop.f32.mrb[0].mxu0
  %v882 = vadd.f32 %v789, %v881
  %v883 = vpop.f32.mrb[0].mxu0
  %884 = vmatprep.mubr.f32.mxu0 0.0
  %885 = vmatmul.mubr.f32.gmra.mrb[0].mxu0 %v806
  %v886 = vpop.f32.mrb[0].mxu0
  %v887 = vadd.f32 %v794, %v886
  %v888 = vpop.f32.mrb[0].mxu0
  %889 = vmatprep.mubr.f32.mxu0 0.0
  %890 = vmatmul.mubr.f32.gmra.mrb[0].mxu0 %v808
  %v891 = vpop.f32.mrb[0].mxu0
  %v892 = vadd.f32 %v799, %v891
  %v893 = vpop.f32.mrb[0].mxu0
  %894 = vdwg.mxu0
  %v895 = vrot.slane %v674, 2
  %v896 = vrot.slane %v666, 2
  %v897 = vsel %vm279, %v895, %v896
  %v898 = vrot.slane %v676, 2
  %v899 = vsel %vm279, %v896, %v898
  %v900 = vrot.slane %v675, 2
  %v901 = vrot.slane %v669, 2
  %v902 = vsel %vm279, %v900, %v901
  %v903 = vrot.slane %v677, 2
  %v904 = vsel %vm279, %v901, %v903
  %s905 = scalar_lea.vmem %s2, 128
  %v906 = vld [vmem:[%s905] sm:$0xff]
  %v907 = vld [vmem:[%s905 + $0x8] sm:$0xff]
  %v908 = vld [vmem:[%s905 + $0x10] sm:$0xff]
  %v909 = vld [vmem:[%s905 + $0x18] sm:$0xff]
  %v910 = vld [vmem:[%s905 + $0x20] sm:$0xff]
  %v911 = vld [vmem:[%s905 + $0x28] sm:$0xff]
  %v912 = vld [vmem:[%s905 + $0x30] sm:$0xff]
  %v913 = vld [vmem:[%s905 + $0x38] sm:$0xff]
  %v914 = vsel %vm92, %v897, 0
  %v916 = vsel %vm92, %v899, 0
  %v918 = vsel %vm92, %v902, 0
  %v920 = vsel %vm92, %v904, 0
  %922 = vmatprep.subr.mxu0 0.0
  %923 = vmatpush1.msra.mxu0 %v906
  %924 = vmatprep.subr.mxu0 0.0
  %925 = vmatpush1.msra.mxu0 %v907
  %926 = vmatprep.subr.mxu0 0.0
  %927 = vmatpush1.msra.mxu0 %v908
  %928 = vmatprep.subr.mxu0 0.0
  %929 = vmatpush1.msra.mxu0 %v909
  %930 = vmatprep.subr.mxu0 0.0
  %931 = vmatpush1.msra.mxu0 %v910
  %932 = vmatprep.subr.mxu0 0.0
  %933 = vmatpush1.msra.mxu0 %v911
  %934 = vmatprep.subr.mxu0 0.0
  %935 = vmatpush1.msra.mxu0 %v912
  %936 = vmatprep.subr.mxu0 0.0
  %937 = vmatpush1.msra.mxu0 %v913
  %938 = vmatprep.subr.mxu0 0.0
  %939 = vmatpush1.msra.mxu0 0.0
  %940 = vmatprep.subr.mxu0 0.0
  %941 = vmatpush1.msra.mxu0 0.0
  %942 = vmatprep.subr.mxu0 0.0
  %943 = vmatpush1.msra.mxu0 0.0
  %944 = vmatprep.subr.mxu0 0.0
  %945 = vmatpush1.msra.mxu0 0.0
  %946 = vmatprep.subr.mxu0 0.0
  %947 = vmatpush1.msra.mxu0 0.0
  %948 = vmatprep.subr.mxu0 0.0
  %949 = vmatpush1.msra.mxu0 0.0
  %950 = vmatprep.subr.mxu0 0.0
  %951 = vmatpush1.msra.mxu0 0.0
  %952 = vmatprep.subr.mxu0 0.0
  %953 = vmatpush1.msra.mxu0 0.0
  %954 = vmatprep.subr.mxu0 0.0
  %955 = vmatpush1.msra.mxu0 0.0
  %956 = vmatprep.subr.mxu0 0.0
  %957 = vmatpush1.msra.mxu0 0.0
  %958 = vmatprep.subr.mxu0 0.0
  %959 = vmatpush1.msra.mxu0 0.0
  %960 = vmatprep.subr.mxu0 0.0
  %961 = vmatpush1.msra.mxu0 0.0
  %962 = vmatprep.subr.mxu0 0.0
  %963 = vmatpush1.msra.mxu0 0.0
  %964 = vmatprep.subr.mxu0 0.0
  %965 = vmatpush1.msra.mxu0 0.0
  %966 = vmatprep.subr.mxu0 0.0
  %967 = vmatpush1.msra.mxu0 0.0
  %968 = vmatprep.subr.mxu0 0.0
  %969 = vmatpush1.msra.mxu0 0.0
  %970 = vmatprep.subr.mxu0 0.0
  %971 = vmatpush1.msra.mxu0 0.0
  %972 = vmatprep.subr.mxu0 0.0
  %973 = vmatpush1.msra.mxu0 0.0
  %974 = vmatprep.subr.mxu0 0.0
  %975 = vmatpush1.msra.mxu0 0.0
  %976 = vmatprep.subr.mxu0 0.0
  %977 = vmatpush1.msra.mxu0 0.0
  %978 = vmatprep.subr.mxu0 0.0
  %979 = vmatpush1.msra.mxu0 0.0
  %980 = vmatprep.subr.mxu0 0.0
  %981 = vmatpush1.msra.mxu0 0.0
  %982 = vmatprep.subr.mxu0 0.0
  %983 = vmatpush1.msra.mxu0 0.0
  %984 = vmatprep.subr.mxu0 0.0
  %985 = vmatpush1.msra.mxu0 0.0
  %986 = vmatprep.mubr.f32.mxu0 0.0
  %987 = vmatmul.mubr.f32.gmra.mrb[0].mxu0 %v914
  %v988 = vpop.f32.mrb[0].mxu0
  %v989 = vadd.f32 0.0, %v988
  %v990 = vpop.f32.mrb[0].mxu0
  %991 = vmatprep.mubr.f32.mxu0 0.0
  %992 = vmatmul.mubr.f32.gmra.mrb[0].mxu0 %v916
  %v993 = vpop.f32.mrb[0].mxu0
  %v994 = vadd.f32 0.0, %v993
  %v995 = vpop.f32.mrb[0].mxu0
  %996 = vmatprep.mubr.f32.mxu0 0.0
  %997 = vmatmul.mubr.f32.gmra.mrb[0].mxu0 %v918
  %v998 = vpop.f32.mrb[0].mxu0
  %v999 = vadd.f32 0.0, %v998
  %v1000 = vpop.f32.mrb[0].mxu0
  %1001 = vmatprep.mubr.f32.mxu0 0.0
  %1002 = vmatmul.mubr.f32.gmra.mrb[0].mxu0 %v920
  %v1003 = vpop.f32.mrb[0].mxu0
  %v1004 = vadd.f32 0.0, %v1003
  %v1005 = vpop.f32.mrb[0].mxu0
  %1006 = vdwg.mxu0
  %v1007 = vadd.f32 %v877, %v989
  %v1008 = vadd.f32 %v882, %v994
  %v1009 = vadd.f32 %v887, %v999
  %v1010 = vadd.f32 %v892, %v1004
  %v1011 = vld [vmem:[%s5] sm:$0x1]
  %v1012 = vld [vmem:[%s6] sm:$0x1]
  %v1014 = vsel %vm92, %v1007, 0
  %v1017 = vsel %vm92, %v1008, 0
  %v1020 = vsel %vm92, %v1009, 0
  %v1023 = vsel %vm92, %v1010, 0
  %1025 = vmatprep.subr.mxu0 0.0
  %1026 = vmatpush1.msra.mxu0 %v33
  %1027 = vmatprep.subr.mxu0 0.0
  %1028 = vmatpush1.msra.mxu0 %v34
  %1029 = vmatprep.subr.mxu0 0.0
  %1030 = vmatpush1.msra.mxu0 %v35
  %1031 = vmatprep.subr.mxu0 0.0
  %1032 = vmatpush1.msra.mxu0 %v36
  %1033 = vmatprep.subr.mxu0 0.0
  %1034 = vmatpush1.msra.mxu0 %v37
  %1035 = vmatprep.subr.mxu0 0.0
  %1036 = vmatpush1.msra.mxu0 %v38
  %1037 = vmatprep.subr.mxu0 0.0
  %1038 = vmatpush1.msra.mxu0 %v39
  %1039 = vmatprep.subr.mxu0 0.0
  %1040 = vmatpush1.msra.mxu0 %v40
  %1041 = vmatprep.subr.mxu0 0.0
  %1042 = vmatpush1.msra.mxu0 0.0
  %1043 = vmatprep.subr.mxu0 0.0
  %1044 = vmatpush1.msra.mxu0 0.0
  %1045 = vmatprep.subr.mxu0 0.0
  %1046 = vmatpush1.msra.mxu0 0.0
  %1047 = vmatprep.subr.mxu0 0.0
  %1048 = vmatpush1.msra.mxu0 0.0
  %1049 = vmatprep.subr.mxu0 0.0
  %1050 = vmatpush1.msra.mxu0 0.0
  %1051 = vmatprep.subr.mxu0 0.0
  %1052 = vmatpush1.msra.mxu0 0.0
  %1053 = vmatprep.subr.mxu0 0.0
  %1054 = vmatpush1.msra.mxu0 0.0
  %1055 = vmatprep.subr.mxu0 0.0
  %1056 = vmatpush1.msra.mxu0 0.0
  %1057 = vmatprep.subr.mxu0 0.0
  %1058 = vmatpush1.msra.mxu0 0.0
  %1059 = vmatprep.subr.mxu0 0.0
  %1060 = vmatpush1.msra.mxu0 0.0
  %1061 = vmatprep.subr.mxu0 0.0
  %1062 = vmatpush1.msra.mxu0 0.0
  %1063 = vmatprep.subr.mxu0 0.0
  %1064 = vmatpush1.msra.mxu0 0.0
  %1065 = vmatprep.subr.mxu0 0.0
  %1066 = vmatpush1.msra.mxu0 0.0
  %1067 = vmatprep.subr.mxu0 0.0
  %1068 = vmatpush1.msra.mxu0 0.0
  %1069 = vmatprep.subr.mxu0 0.0
  %1070 = vmatpush1.msra.mxu0 0.0
  %1071 = vmatprep.subr.mxu0 0.0
  %1072 = vmatpush1.msra.mxu0 0.0
  %1073 = vmatprep.subr.mxu0 0.0
  %1074 = vmatpush1.msra.mxu0 0.0
  %1075 = vmatprep.subr.mxu0 0.0
  %1076 = vmatpush1.msra.mxu0 0.0
  %1077 = vmatprep.subr.mxu0 0.0
  %1078 = vmatpush1.msra.mxu0 0.0
  %1079 = vmatprep.subr.mxu0 0.0
  %1080 = vmatpush1.msra.mxu0 0.0
  %1081 = vmatprep.subr.mxu0 0.0
  %1082 = vmatpush1.msra.mxu0 0.0
  %1083 = vmatprep.subr.mxu0 0.0
  %1084 = vmatpush1.msra.mxu0 0.0
  %1085 = vmatprep.subr.mxu0 0.0
  %1086 = vmatpush1.msra.mxu0 0.0
  %1087 = vmatprep.subr.mxu0 0.0
  %1088 = vmatpush1.msra.mxu0 0.0
  %1089 = vmatprep.mubr.f32.mxu0 0.0
  %1090 = vmatmul.mubr.f32.gmra.mrb[0].mxu0 %v1014
  %v1091 = vpop.f32.mrb[0].mxu0
  %v1092 = vadd.f32 0.0, %v1091
  %v1093 = vpop.f32.mrb[0].mxu0
  %1094 = vmatprep.mubr.f32.mxu0 0.0
  %1095 = vmatmul.mubr.f32.gmra.mrb[0].mxu0 %v1017
  %v1096 = vpop.f32.mrb[0].mxu0
  %v1097 = vadd.f32 0.0, %v1096
  %v1098 = vpop.f32.mrb[0].mxu0
  %1099 = vmatprep.mubr.f32.mxu0 0.0
  %1100 = vmatmul.mubr.f32.gmra.mrb[0].mxu0 %v1020
  %v1101 = vpop.f32.mrb[0].mxu0
  %v1102 = vadd.f32 0.0, %v1101
  %v1103 = vpop.f32.mrb[0].mxu0
  %1104 = vmatprep.mubr.f32.mxu0 0.0
  %1105 = vmatmul.mubr.f32.gmra.mrb[0].mxu0 %v1023
  %v1106 = vpop.f32.mrb[0].mxu0
  %v1107 = vadd.f32 0.0, %v1106
  %v1108 = vpop.f32.mrb[0].mxu0
  %1109 = vdwg.mxu0
  %v1110 = vmul.f32 %v1007, %v1007
  %v1111 = vmul.f32 %v1008, %v1008
  %v1112 = vmul.f32 %v1009, %v1009
  %v1113 = vmul.f32 %v1010, %v1010
  %v1115 = vsel %vm92, %v1110, 0
  %v1118 = vsel %vm92, %v1111, 0
  %v1121 = vsel %vm92, %v1112, 0
  %v1124 = vsel %vm92, %v1113, 0
  %1126 = vmatprep.subr.mxu0 0.0
  %1127 = vmatpush1.msra.mxu0 %v33
  %1128 = vmatprep.subr.mxu0 0.0
  %1129 = vmatpush1.msra.mxu0 %v34
  %1130 = vmatprep.subr.mxu0 0.0
  %1131 = vmatpush1.msra.mxu0 %v35
  %1132 = vmatprep.subr.mxu0 0.0
  %1133 = vmatpush1.msra.mxu0 %v36
  %1134 = vmatprep.subr.mxu0 0.0
  %1135 = vmatpush1.msra.mxu0 %v37
  %1136 = vmatprep.subr.mxu0 0.0
  %1137 = vmatpush1.msra.mxu0 %v38
  %1138 = vmatprep.subr.mxu0 0.0
  %1139 = vmatpush1.msra.mxu0 %v39
  %1140 = vmatprep.subr.mxu0 0.0
  %1141 = vmatpush1.msra.mxu0 %v40
  %1142 = vmatprep.subr.mxu0 0.0
  %1143 = vmatpush1.msra.mxu0 0.0
  %1144 = vmatprep.subr.mxu0 0.0
  %1145 = vmatpush1.msra.mxu0 0.0
  %1146 = vmatprep.subr.mxu0 0.0
  %1147 = vmatpush1.msra.mxu0 0.0
  %1148 = vmatprep.subr.mxu0 0.0
  %1149 = vmatpush1.msra.mxu0 0.0
  %1150 = vmatprep.subr.mxu0 0.0
  %1151 = vmatpush1.msra.mxu0 0.0
  %1152 = vmatprep.subr.mxu0 0.0
  %1153 = vmatpush1.msra.mxu0 0.0
  %1154 = vmatprep.subr.mxu0 0.0
  %1155 = vmatpush1.msra.mxu0 0.0
  %1156 = vmatprep.subr.mxu0 0.0
  %1157 = vmatpush1.msra.mxu0 0.0
  %1158 = vmatprep.subr.mxu0 0.0
  %1159 = vmatpush1.msra.mxu0 0.0
  %1160 = vmatprep.subr.mxu0 0.0
  %1161 = vmatpush1.msra.mxu0 0.0
  %1162 = vmatprep.subr.mxu0 0.0
  %1163 = vmatpush1.msra.mxu0 0.0
  %1164 = vmatprep.subr.mxu0 0.0
  %1165 = vmatpush1.msra.mxu0 0.0
  %1166 = vmatprep.subr.mxu0 0.0
  %1167 = vmatpush1.msra.mxu0 0.0
  %1168 = vmatprep.subr.mxu0 0.0
  %1169 = vmatpush1.msra.mxu0 0.0
  %1170 = vmatprep.subr.mxu0 0.0
  %1171 = vmatpush1.msra.mxu0 0.0
  %1172 = vmatprep.subr.mxu0 0.0
  %1173 = vmatpush1.msra.mxu0 0.0
  %1174 = vmatprep.subr.mxu0 0.0
  %1175 = vmatpush1.msra.mxu0 0.0
  %1176 = vmatprep.subr.mxu0 0.0
  %1177 = vmatpush1.msra.mxu0 0.0
  %1178 = vmatprep.subr.mxu0 0.0
  %1179 = vmatpush1.msra.mxu0 0.0
  %1180 = vmatprep.subr.mxu0 0.0
  %1181 = vmatpush1.msra.mxu0 0.0
  %1182 = vmatprep.subr.mxu0 0.0
  %1183 = vmatpush1.msra.mxu0 0.0
  %1184 = vmatprep.subr.mxu0 0.0
  %1185 = vmatpush1.msra.mxu0 0.0
  %1186 = vmatprep.subr.mxu0 0.0
  %1187 = vmatpush1.msra.mxu0 0.0
  %1188 = vmatprep.subr.mxu0 0.0
  %1189 = vmatpush1.msra.mxu0 0.0
  %1190 = vmatprep.mubr.f32.mxu0 0.0
  %1191 = vmatmul.mubr.f32.gmra.mrb[0].mxu0 %v1115
  %v1192 = vpop.f32.mrb[0].mxu0
  %v1193 = vadd.f32 0.0, %v1192
  %v1194 = vpop.f32.mrb[0].mxu0
  %1195 = vmatprep.mubr.f32.mxu0 0.0
  %1196 = vmatmul.mubr.f32.gmra.mrb[0].mxu0 %v1118
  %v1197 = vpop.f32.mrb[0].mxu0
  %v1198 = vadd.f32 0.0, %v1197
  %v1199 = vpop.f32.mrb[0].mxu0
  %1200 = vmatprep.mubr.f32.mxu0 0.0
  %1201 = vmatmul.mubr.f32.gmra.mrb[0].mxu0 %v1121
  %v1202 = vpop.f32.mrb[0].mxu0
  %v1203 = vadd.f32 0.0, %v1202
  %v1204 = vpop.f32.mrb[0].mxu0
  %1205 = vmatprep.mubr.f32.mxu0 0.0
  %1206 = vmatmul.mubr.f32.gmra.mrb[0].mxu0 %v1124
  %v1207 = vpop.f32.mrb[0].mxu0
  %v1208 = vadd.f32 0.0, %v1207
  %v1209 = vpop.f32.mrb[0].mxu0
  %1210 = vdwg.mxu0
  %v1211 = vsel %vm92, %v1092, 0.0
  %v1212 = vsel %vm92, %v1097, 0.0
  %v1213 = vadd.f32 %v1211, %v1212
  %v1214 = vsel %vm92, %v1102, 0.0
  %v1215 = vadd.f32 %v1213, %v1214
  %v1216 = vsel %vm92, %v1107, 0.0
  %v1217 = vadd.f32 %v1215, %v1216
  %v1218 = vrot.slane %v1217, 4
  %v1219 = vadd.f32 %v1217, %v1218
  %v1220 = vrot.slane %v1219, 2
  %v1221 = vadd.f32 %v1219, %v1220
  %v1222 = vrot.slane %v1221, 1
  %v1223 = vadd.f32 %v1221, %v1222
  %v1224 = vmul.f32 %v1223, 0.001953125
  %v1225 = vsel %vm92, %v1193, 0.0
  %v1226 = vsel %vm92, %v1198, 0.0
  %v1227 = vadd.f32 %v1225, %v1226
  %v1228 = vsel %vm92, %v1203, 0.0
  %v1229 = vadd.f32 %v1227, %v1228
  %v1230 = vsel %vm92, %v1208, 0.0
  %v1231 = vadd.f32 %v1229, %v1230
  %v1232 = vrot.slane %v1231, 4
  %v1233 = vadd.f32 %v1231, %v1232
  %v1234 = vrot.slane %v1233, 2
  %v1235 = vadd.f32 %v1233, %v1234
  %v1236 = vrot.slane %v1235, 1
  %v1237 = vadd.f32 %v1235, %v1236
  %v1238 = vmul.f32 %v1237, 0.001953125
  %v1239 = vmul.f32 %v1224, %v1224
  %v1240 = vsub.f32 %v1238, %v1239
  %v1241 = vsub.f32 %v1007, %v1224
  %v1242 = vsub.f32 %v1008, %v1224
  %v1243 = vsub.f32 %v1009, %v1224
  %v1244 = vsub.f32 %v1010, %v1224
  %v1245 = vadd.f32 %v1240, 1e-05
  %v1246 = vrsqrt.pop %v1245
  %v1247 = vmul.f32 %v1241, %v1246
  %v1248 = vmul.f32 %v1242, %v1246
  %v1249 = vmul.f32 %v1243, %v1246
  %v1250 = vmul.f32 %v1244, %v1246
  %v1252 = vlaneseq
  %v1253 = vshrl.u32 %v1252, 7
  %v1254 = vsub.s32 0, %v1253
  %v1255 = vrot.slane %v1011, %v1254
  %v1257 = vmul.f32 %v1247, %v1255
  %v1258 = vmul.f32 %v1248, %v1255
  %v1259 = vmul.f32 %v1249, %v1255
  %v1260 = vmul.f32 %v1250, %v1255
  %v1262 = vlaneseq
  %v1263 = vshrl.u32 %v1262, 7
  %v1264 = vsub.s32 0, %v1263
  %v1265 = vrot.slane %v1012, %v1264
  %v1267 = vadd.f32 %v1257, %v1265
  %v1268 = vadd.f32 %v1258, %v1265
  %v1269 = vadd.f32 %v1259, %v1265
  %v1270 = vadd.f32 %v1260, %v1265
  %v1271 = vadd.f32 %v1267, %v29
  %v1272 = vadd.f32 %v1268, %v30
  %v1273 = vadd.f32 %v1269, %v31
  %v1274 = vadd.f32 %v1270, %v32
  %v1275 = vmax.f32 %v1271, 0.0
  %v1276 = vmax.f32 %v1272, 0.0
  %v1277 = vmax.f32 %v1273, 0.0
  %v1278 = vmax.f32 %v1274, 0.0
  %1279 = vst.msk [vmem:[%s8] sm:$0xff] %vm92, %v1275
  %1280 = vst.msk [vmem:[%s8 + $0x8] sm:$0xff] %vm92, %v1276
  %1281 = vst.msk [vmem:[%s8 + $0x10] sm:$0xff] %vm92, %v1277
  %1282 = vst.msk [vmem:[%s8 + $0x18] sm:$0xff] %vm92, %v1278
  // Predicated region
  $region34: #{basic_block_forward.1} parent=0 // pred_check
    _
  $region35: #{basic_block_forward.1} parent=0 // pred_check_branch
    %1284 = sbr.rel (0) target = $region37
  $region36: #{basic_block_forward.1} parent=0 // pred_region
    _
  $region37: #{basic_block_forward.1} parent=0 // pred_fallthru
    _
  // Predicated region
  $region38: #{basic_block_forward.1} parent=0 // pred_check
    _
  $region39: #{basic_block_forward.1} parent=0 // pred_check_branch
    %1286 = sbr.rel (0) target = $region41
  $region40: #{basic_block_forward.1} parent=0 // pred_region
    _
  $region41: #{basic_block_forward.1} parent=0 // pred_fallthru
    _

</llo_original>
